<compile_context>
chip_gen: v5e
topology: v5e:2x2
jax: 0.10.0
libtpu: 0.0.40
codegen_flags: <defaults>
</compile_context>

<pallas_src>
import math
import jax
import jax.numpy as jnp
from jax.experimental import pallas as pl
from jax.experimental.pallas import tpu as pltpu

LATENT_TOKEN_ID = 1
START_TOKEN_ID = 2
END_LATENT_TOKEN_ID = 3
EOS_TOKEN_ID = 0
IGNORE_INDEX = -100
MAX_N_LATENT = 8

LANE = 128


def _round_up(x, m):
    return ((x + m - 1) // m) * m


def _pad_last(a, to):
    a = a.astype(jnp.float32)
    pad = to - a.shape[-1]
    if pad == 0:
        return a
    cfg = [(0, 0)] * (a.ndim - 1) + [(0, pad)]
    return jnp.pad(a, cfg)


def _pad2(w, rows, cols):
    w = w.astype(jnp.float32)
    return jnp.pad(w, ((0, rows - w.shape[0]), (0, cols - w.shape[1])))


def _two_tensorcores():
    """True only on 2-TensorCore chips (v7x). v5e/v6e are single-TC."""
    try:
        kind = jax.devices()[0].device_kind.lower()
    except Exception:
        return False
    return "7" in kind


# ---------------------------------------------------------------------------
# Fused multi-pass Coconut kernel: all passes + latent fills + LM head + CE.
# ---------------------------------------------------------------------------
def _make_coconut_kernel(total_batch, v_real):
    def kernel(fill_ref,                              # SMEM (n_passes*B,) int32 (prefetch)
               emb_ref, pos_ref, bias_ref, lab_ref,   # (BB,T,Hp), (BB,T,Hp), (BB,T,T), (BB,T,1)
               wqkv_ref, wo_ref, w1_ref, w2_ref, wlm_ref,  # bf16 weights (VMEM-resident)
               embeds_out_ref, logits_out_ref, loss_ref,   # (BB,T,Hp), (BB,T,Vp), (1,1,LANE)
               hid_ref):                              # VMEM scratch (BB,T,Hp) f32
        bb = pl.program_id(0)
        p = pl.program_id(1)
        n_passes = pl.num_programs(1)

        # Pass 0: load token embeddings into the VMEM-resident output block that
        # is carried (and updated in place by latent fills) across all passes.
        @pl.when(p == 0)
        def _():
            embeds_out_ref[...] = emb_ref[...]

        x = embeds_out_ref[...] + pos_ref[...]                 # (BB,T,Hp) f32
        BB, T, Hp = x.shape
        x2 = x.reshape(BB * T, Hp)
        xb = x2.astype(jnp.bfloat16)                            # single activation cast

        # Fused QKV: one (BB*T,Hp) x (Hp,3Hp) matmul; 1/sqrt(H) folded into Wq.
        qkv = jnp.dot(xb, wqkv_ref[...], preferred_element_type=jnp.float32)
        q = qkv[:, 0 * Hp:1 * Hp].reshape(BB, T, Hp).astype(jnp.bfloat16)
        k = qkv[:, 1 * Hp:2 * Hp].reshape(BB, T, Hp).astype(jnp.bfloat16)
        v = qkv[:, 2 * Hp:3 * Hp].reshape(BB, T, Hp).astype(jnp.bfloat16)

        # Attention: precomputed additive causal+padding bias (0 / -1e30).
        scores = jnp.einsum('btd,bsd->bts', q, k,
                            preferred_element_type=jnp.float32)   # (BB,T,T) f32
        scores = scores + bias_ref[...]
        scores = scores - jnp.max(scores, axis=-1, keepdims=True)
        probs = jnp.exp(scores)
        inv = pl.reciprocal(jnp.sum(probs, axis=-1, keepdims=True), approx=True)
        probs_b = (probs * inv).astype(jnp.bfloat16)

        attn = jnp.einsum('bts,bsd->btd', probs_b, v,
                          preferred_element_type=jnp.float32)
        attn2 = attn.reshape(BB * T, Hp).astype(jnp.bfloat16)
        h = x2 + jnp.dot(attn2, wo_ref[...], preferred_element_type=jnp.float32)
        hb = h.astype(jnp.bfloat16)
        mlp = jnp.maximum(jnp.dot(hb, w1_ref[...],
                                  preferred_element_type=jnp.float32), 0.0)
        h2 = h + jnp.dot(mlp.astype(jnp.bfloat16), w2_ref[...],
                         preferred_element_type=jnp.float32)       # (BB*T,Hp) f32

        # Latent fill for this pass: embeds[b, t] <- hidden[b, t-1].
        # Fill-table entry is -1 (or 0, never produced by the collator) when
        # this (pass, row) has nothing to fill.  Skipped on the final pass.
        @pl.when(p < n_passes - 1)
        def _():
            hid_ref[...] = h2.reshape(BB, T, Hp)
            for b in range(BB):
                t = fill_ref[p * total_batch + bb * BB + b]
                dst = embeds_out_ref.at[b]
                src = hid_ref.at[b]

                @pl.when(t > 0)
                def _(dst=dst, src=src, t=t):
                    dst[pl.ds(t, 1), :] = src[pl.ds(t - 1, 1), :]

        # Final pass only: LM head + fused shifted cross-entropy partials.
        @pl.when(p == n_passes - 1)
        def _():
            Vp = logits_out_ref.shape[-1]
            logits_f = jnp.dot(h2.astype(jnp.bfloat16), wlm_ref[...],
                               preferred_element_type=jnp.float32)   # (BB*T,Vp)
            logits_out_ref[...] = logits_f.reshape(BB, T, Vp)

            lab = lab_ref[...].reshape(BB * T, 1)                    # pre-shifted labels
            col = jax.lax.broadcasted_iota(jnp.int32, (BB * T, Vp), 1)
            xm = jnp.where(col < v_real, logits_f, -1e30)            # mask padded vocab lanes
            m = jnp.max(xm, axis=-1, keepdims=True)
            lse = m + jnp.log(jnp.sum(jnp.exp(xm - m), axis=-1, keepdims=True))
            picked = jnp.sum(jnp.where(col == lab, xm, 0.0), axis=-1, keepdims=True)
            valid = lab != IGNORE_INDEX
            per_tok = jnp.where(valid, lse - picked, 0.0)
            tok_sum = jnp.sum(per_tok, axis=0, keepdims=True).reshape(1, 1, 1)
            tok_cnt = jnp.sum(valid.astype(jnp.float32), axis=0,
                              keepdims=True).reshape(1, 1, 1)
            lane = jax.lax.broadcasted_iota(jnp.int32, (1, 1, LANE), 2)
            loss_ref[...] = (jnp.where(lane == 0, tok_sum, 0.0) +
                             jnp.where(lane == 1, tok_cnt, 0.0))

    return kernel


# ---------------------------------------------------------------------------
# Coconut forward (multi-pass latent filling), mirrors the PyTorch module.
# ---------------------------------------------------------------------------
def coconut_forward(params, input_ids, attention_mask, labels, position_ids,
                    max_n_latents=None):
    B, T = input_ids.shape
    H = params["wq"].shape[0]
    F = params["w1"].shape[1]
    V = params["wlm"].shape[1]
    Hp, Fp, Vp = _round_up(H, LANE), _round_up(F, LANE), _round_up(V, LANE)

    input_ids = input_ids.astype(jnp.int32)

    # Static pass count (grid extent).  In a training loop pass a static bound
    # (e.g. MAX_N_LATENT) to avoid this single device->host sync.
    if max_n_latents is None:
        max_n_latents = int(jnp.max(jnp.sum(input_ids == LATENT_TOKEN_ID, axis=1)))
    n_passes = max_n_latents + 1

    # (n_passes, B) latent-fill table, built on device with jnp (no np/host loop).
    is_latent = input_ids == LATENT_TOKEN_ID
    occ = jnp.cumsum(is_latent.astype(jnp.int32), axis=1) - 1            # occurrence idx
    tpos = jnp.arange(T, dtype=jnp.int32)[None, None, :]
    p_idx = jnp.arange(max_n_latents, dtype=jnp.int32)[:, None, None]
    sel = is_latent[None, :, :] & (occ[None, :, :] == p_idx)             # (P-1,B,T)
    tok = jnp.sum(jnp.where(sel, tpos, 0), axis=2)
    has = jnp.any(sel, axis=2)
    fill = jnp.where(has, tok, -1).astype(jnp.int32)                     # (P-1,B)
    fill = jnp.concatenate([fill, jnp.full((1, B), -1, jnp.int32)], axis=0)
    fill_flat = fill.reshape(-1)

    # Lane-dense (128-padded) operands; weights bf16; attention scale folded in Wq.
    emb = _pad_last(params["embedding"][input_ids], Hp)                  # (B,T,Hp)
    pos = _pad_last(params["pos_embedding"][position_ids], Hp)           # (B,T,Hp)

    rows = jnp.arange(T, dtype=jnp.int32)[:, None]
    cols = jnp.arange(T, dtype=jnp.int32)[None, :]
    keep = (cols <= rows)[None, :, :] & (attention_mask[:, None, :] > 0)
    bias = jnp.where(keep, 0.0, -1e30).astype(jnp.float32)               # (B,T,T)

    shifted_labels = jnp.concatenate(
        [labels[:, 1:], jnp.full((B, 1), IGNORE_INDEX, labels.dtype)],
        axis=1).astype(jnp.int32).reshape(B, T, 1)                       # (B,T,1)

    scale = 1.0 / math.sqrt(H)
    wqkv = jnp.concatenate([_pad2(params["wq"] * scale, Hp, Hp),
                            _pad2(params["wk"], Hp, Hp),
                            _pad2(params["wv"], Hp, Hp)],
                           axis=1).astype(jnp.bfloat16)                  # (Hp,3Hp)
    wo = _pad2(params["wo"], Hp, Hp).astype(jnp.bfloat16)
    w1 = _pad2(params["w1"], Hp, Fp).astype(jnp.bfloat16)
    w2 = _pad2(params["w2"], Fp, Hp).astype(jnp.bfloat16)
    wlm = _pad2(params["wlm"], Hp, Vp).astype(jnp.bfloat16)

    # One batch block per TensorCore: v7x -> 2, single-TC v5e/v6e -> 1
    # (batch split on a single-TC chip is pure per-step overhead).
    n_bb = 2 if (_two_tensorcores() and B >= 2 and B % 2 == 0) else 1
    BB = B // n_bb

    grid_spec = pltpu.PrefetchScalarGridSpec(
        num_scalar_prefetch=1,
        grid=(n_bb, n_passes),
        in_specs=[
            pl.BlockSpec((BB, T, Hp), lambda bb, p, fills: (bb, 0, 0)),  # token embeds
            pl.BlockSpec((BB, T, Hp), lambda bb, p, fills: (bb, 0, 0)),  # pos embeds
            pl.BlockSpec((BB, T, T), lambda bb, p, fills: (bb, 0, 0)),   # additive mask bias
            pl.BlockSpec((BB, T, 1), lambda bb, p, fills: (bb, 0, 0)),   # shifted labels
            # Constant-index weights: VMEM-resident across all passes.
            # TODO(synk): pl.Buffered(1) weights + a vocab grid axis on the LM head
            # before scaling H/F/V against v7x's 64 MiB per-TC VMEM.
            pl.BlockSpec((Hp, 3 * Hp), lambda bb, p, fills: (0, 0)),     # fused Wqkv
            pl.BlockSpec((Hp, Hp), lambda bb, p, fills: (0, 0)),         # Wo
            pl.BlockSpec((Hp, Fp), lambda bb, p, fills: (0, 0)),         # W1
            pl.BlockSpec((Fp, Hp), lambda bb, p, fills: (0, 0)),         # W2
            pl.BlockSpec((Hp, Vp), lambda bb, p, fills: (0, 0)),         # LM head
        ],
        out_specs=[
            pl.BlockSpec((BB, T, Hp), lambda bb, p, fills: (bb, 0, 0)),  # inputs_embeds
            pl.BlockSpec((BB, T, Vp), lambda bb, p, fills: (bb, 0, 0)),  # logits
            pl.BlockSpec((1, 1, LANE), lambda bb, p, fills: (bb, 0, 0)),  # CE partials
        ],
        scratch_shapes=[pltpu.VMEM((BB, T, Hp), jnp.float32)],
    )

    embeds_out, logits_pad, loss_part = pl.pallas_call(
        _make_coconut_kernel(B, V),
        grid_spec=grid_spec,
        out_shape=[jax.ShapeDtypeStruct((B, T, Hp), jnp.float32),
                   jax.ShapeDtypeStruct((B, T, Vp), jnp.float32),
                   jax.ShapeDtypeStruct((n_bb, 1, LANE), jnp.float32)],
        compiler_params=pltpu.CompilerParams(
            dimension_semantics=("parallel", "arbitrary"),
            vmem_limit_bytes=32 * 1024 * 1024),
    )(fill_flat, emb, pos, bias, shifted_labels, wqkv, wo, w1, w2, wlm)

    inputs_embeds = embeds_out[:, :, :H]
    logits = logits_pad[:, :, :V]

    # Combine per-batch-block (sum, count) CE partials; guard the all-ignored case.
    total_sum = jnp.sum(loss_part[:, 0, 0])
    total_cnt = jnp.sum(loss_part[:, 0, 1])
    loss = total_sum / jnp.maximum(total_cnt, 1.0)
    return loss, inputs_embeds, logits


# ---------------------------------------------------------------------------
# Deterministic parameter init (synthetic base causal LM).
# ---------------------------------------------------------------------------
def init_params(vocab, hidden, ffn, max_pos, key):
    ks = jax.random.split(key, 9)
    s = 0.05
    return {
        "embedding":     jax.random.normal(ks[0], (vocab, hidden), jnp.float32) * s,
        "pos_embedding": jax.random.normal(ks[1], (max_pos, hidden), jnp.float32) * s,
        "wq":  jax.random.normal(ks[2], (hidden, hidden), jnp.float32) * s,
        "wk":  jax.random.normal(ks[3], (hidden, hidden), jnp.float32) * s,
        "wv":  jax.random.normal(ks[4], (hidden, hidden), jnp.float32) * s,
        "wo":  jax.random.normal(ks[5], (hidden, hidden), jnp.float32) * s,
        "w1":  jax.random.normal(ks[6], (hidden, ffn), jnp.float32) * s,
        "w2":  jax.random.normal(ks[7], (ffn, hidden), jnp.float32) * s,
        "wlm": jax.random.normal(ks[8], (hidden, vocab), jnp.float32) * s,
    }


if __name__ == "__main__":
    B, T, H, V, F = 2, 8, 32, 64, 128
    key = jax.random.PRNGKey(0)
    params = init_params(vocab=V, hidden=H, ffn=F, max_pos=T, key=key)

    # Latent tokens aligned across the batch (as the Coconut data collator does).
    input_ids = jnp.array([
        [START_TOKEN_ID, 10, 11, LATENT_TOKEN_ID, LATENT_TOKEN_ID, END_LATENT_TOKEN_ID, 12, 13],
        [START_TOKEN_ID, 14, 15, LATENT_TOKEN_ID, END_LATENT_TOKEN_ID, 16, 17, 18],
    ], dtype=jnp.int32)
    attention_mask = jnp.ones((B, T), dtype=jnp.int32)
    position_ids = jnp.broadcast_to(jnp.arange(T, dtype=jnp.int32), (B, T))
    labels = jnp.array([
        [IGNORE_INDEX] * 6 + [12, 13],
        [IGNORE_INDEX] * 5 + [16, 17, 18],
    ], dtype=jnp.int32)

    loss, inputs_embeds, logits = coconut_forward(
        params, input_ids, attention_mask, labels, position_ids)
    jax.block_until_ready((loss, inputs_embeds, logits))

    assert logits.shape == (B, T, V)
    assert inputs_embeds.shape == (B, T, H)
    assert bool(jnp.isfinite(loss))
    print("KERNEL_OK")
</pallas_src>

<mosaic_0001>
module attributes {stable_mosaic.version = 11 : i64} {
  func.func @kernel(%arg0: i32, %arg1: i32, %arg2: memref<6xi32, #tpu.memory_space<smem>>, %arg3: memref<2x8x128xf32, #tpu.memory_space<vmem>>, %arg4: memref<2x8x128xf32, #tpu.memory_space<vmem>>, %arg5: memref<2x8x8xf32, #tpu.memory_space<vmem>>, %arg6: memref<2x8x1xi32, #tpu.memory_space<vmem>>, %arg7: memref<128x384xbf16, #tpu.memory_space<vmem>>, %arg8: memref<128x128xbf16, #tpu.memory_space<vmem>>, %arg9: memref<128x128xbf16, #tpu.memory_space<vmem>>, %arg10: memref<128x128xbf16, #tpu.memory_space<vmem>>, %arg11: memref<128x128xbf16, #tpu.memory_space<vmem>>, %arg12: memref<2x8x128xf32, #tpu.memory_space<vmem>>, %arg13: memref<2x8x128xf32, #tpu.memory_space<vmem>>, %arg14: memref<1x1x128xf32, #tpu.memory_space<vmem>>, %arg15: memref<2x8x128xf32, #tpu.memory_space<vmem>>) attributes {dimension_semantics = [#tpu.dimension_semantics<parallel>, #tpu.dimension_semantics<arbitrary>], iteration_bounds = array<i64: 1, 3>, scalar_prefetch = 1 : i64, scratch_operands = 1 : i64, tpu.core_type = #tpu.core_type<tc>, window_params = [{transform_indices = @transform_0, window_bounds = array<i64: 2, 8, 128>}, {transform_indices = @transform_1, window_bounds = array<i64: 2, 8, 128>}, {transform_indices = @transform_2, window_bounds = array<i64: 2, 8, 8>}, {transform_indices = @transform_3, window_bounds = array<i64: 2, 8, 1>}, {pipeline_mode = #tpu.pipeline_mode<synchronous>, transform_indices = @transform_4, window_bounds = array<i64: 128, 384>}, {pipeline_mode = #tpu.pipeline_mode<synchronous>, transform_indices = @transform_5, window_bounds = array<i64: 128, 128>}, {pipeline_mode = #tpu.pipeline_mode<synchronous>, transform_indices = @transform_6, window_bounds = array<i64: 128, 128>}, {pipeline_mode = #tpu.pipeline_mode<synchronous>, transform_indices = @transform_7, window_bounds = array<i64: 128, 128>}, {pipeline_mode = #tpu.pipeline_mode<synchronous>, transform_indices = @transform_8, window_bounds = array<i64: 128, 128>}, {transform_indices = @transform_9, window_bounds = array<i64: 2, 8, 128>}, {transform_indices = @transform_10, window_bounds = array<i64: 2, 8, 128>}, {transform_indices = @transform_11, window_bounds = array<i64: 1, 1, 128>}]} {
    %c0_i32 = arith.constant 0 : i32
    %0 = arith.cmpi eq, %arg1, %c0_i32 : i32
    %1 = arith.extui %0 : i1 to i32
    %c0_i32_0 = arith.constant 0 : i32
    %2 = arith.cmpi ne, %1, %c0_i32_0 : i32
    scf.if %2 {
      %c0_28 = arith.constant 0 : index
      %c0_29 = arith.constant 0 : index
      %c0_30 = arith.constant 0 : index
      %54 = vector.load %arg3[%c0_28, %c0_29, %c0_30] : memref<2x8x128xf32, #tpu.memory_space<vmem>>, vector<2x8x128xf32>
      %c0_31 = arith.constant 0 : index
      %c0_32 = arith.constant 0 : index
      %c0_33 = arith.constant 0 : index
      %55 = vector.load %arg12[%c0_31, %c0_32, %c0_33] : memref<2x8x128xf32, #tpu.memory_space<vmem>>, vector<2x8x128xf32>
      tpu.vector_store %arg12[%c0_31, %c0_32, %c0_33], %54 {strides = array<i32>} : memref<2x8x128xf32, #tpu.memory_space<vmem>>, vector<2x8x128xf32>,
    } else {
    }
    %c0 = arith.constant 0 : index
    %c0_1 = arith.constant 0 : index
    %c0_2 = arith.constant 0 : index
    %3 = vector.load %arg12[%c0, %c0_1, %c0_2] : memref<2x8x128xf32, #tpu.memory_space<vmem>>, vector<2x8x128xf32>
    %c0_3 = arith.constant 0 : index
    %c0_4 = arith.constant 0 : index
    %c0_5 = arith.constant 0 : index
    %4 = vector.load %arg4[%c0_3, %c0_4, %c0_5] : memref<2x8x128xf32, #tpu.memory_space<vmem>>, vector<2x8x128xf32>
    %5 = arith.addf %3, %4 : vector<2x8x128xf32>
    %6 = vector.shape_cast %5 : vector<2x8x128xf32> to vector<16x128xf32>
    %7 = arith.truncf %6 : vector<16x128xf32> to vector<16x128xbf16>
    %c0_6 = arith.constant 0 : index
    %c0_7 = arith.constant 0 : index
    %8 = vector.load %arg7[%c0_6, %c0_7] : memref<128x384xbf16, #tpu.memory_space<vmem>>, vector<128x384xbf16>
    %cst = arith.constant dense<0.000000e+00> : vector<16x384xf32>
    %9 = tpu.matmul %7, %8, %cst {dimension_numbers = #tpu.dot_dimension_numbers<[1], [0], [0], [1], [0, 0, 1, 1], [], []>} : vector<16x128xbf16>, vector<128x384xbf16>, vector<16x384xf32> -> vector<16x384xf32>
    %10 = vector.extract_strided_slice %9 {offsets = [0, 0], sizes = [16, 128], strides = [1, 1]} : vector<16x384xf32> to vector<16x128xf32>
    %11 = vector.shape_cast %10 : vector<16x128xf32> to vector<2x8x128xf32>
    %12 = arith.truncf %11 : vector<2x8x128xf32> to vector<2x8x128xbf16>
    %13 = vector.extract_strided_slice %9 {offsets = [0, 128], sizes = [16, 128], strides = [1, 1]} : vector<16x384xf32> to vector<16x128xf32>
    %14 = vector.shape_cast %13 : vector<16x128xf32> to vector<2x8x128xf32>
    %15 = arith.truncf %14 : vector<2x8x128xf32> to vector<2x8x128xbf16>
    %16 = vector.extract_strided_slice %9 {offsets = [0, 256], sizes = [16, 128], strides = [1, 1]} : vector<16x384xf32> to vector<16x128xf32>
    %17 = vector.shape_cast %16 : vector<16x128xf32> to vector<2x8x128xf32>
    %18 = arith.truncf %17 : vector<2x8x128xf32> to vector<2x8x128xbf16>
    "tpu.trace_start"() <{level = 10 : i32, message = "btd,bsd->bts"}> : () -> ()
    %cst_8 = arith.constant dense<0.000000e+00> : vector<2x8x8xf32>
    %19 = tpu.matmul %12, %15, %cst_8 {dimension_numbers = #tpu.dot_dimension_numbers<[2], [2], [1], [1], [0, 0, 0, 1, 1, 1], [0], [0]>} : vector<2x8x128xbf16>, vector<2x8x128xbf16>, vector<2x8x8xf32> -> vector<2x8x8xf32>
    "tpu.trace_stop"() : () -> ()
    %c0_9 = arith.constant 0 : index
    %c0_10 = arith.constant 0 : index
    %c0_11 = arith.constant 0 : index
    %20 = vector.load %arg5[%c0_9, %c0_10, %c0_11] : memref<2x8x8xf32, #tpu.memory_space<vmem>>, vector<2x8x8xf32>
    %21 = arith.addf %19, %20 : vector<2x8x8xf32>
    %cst_12 = arith.constant dense<0xFF800000> : vector<2x8xf32>
    %22 = vector.multi_reduction <maximumf>, %21, %cst_12 [2] : vector<2x8x8xf32> to vector<2x8xf32>
    %23 = vector.shape_cast %22 : vector<2x8xf32> to vector<2x8x1xf32>
    %24 = vector.broadcast %23 : vector<2x8x1xf32> to vector<2x8x8xf32>
    %25 = arith.subf %21, %24 : vector<2x8x8xf32>
    %26 = math.exp %25 : vector<2x8x8xf32>
    %cst_13 = arith.constant dense<0.000000e+00> : vector<2x8xf32>
    %27 = vector.multi_reduction <add>, %26, %cst_13 [2] : vector<2x8x8xf32> to vector<2x8xf32>
    %28 = vector.shape_cast %27 : vector<2x8xf32> to vector<2x8x1xf32>
    %29 = tpu.reciprocal %28 {approx = true} : vector<2x8x1xf32> -> vector<2x8x1xf32>
    %30 = vector.broadcast %29 : vector<2x8x1xf32> to vector<2x8x8xf32>
    %31 = arith.mulf %26, %30 : vector<2x8x8xf32>
    %32 = arith.truncf %31 : vector<2x8x8xf32> to vector<2x8x8xbf16>
    "tpu.trace_start"() <{level = 10 : i32, message = "bts,bsd->btd"}> : () -> ()
    %cst_14 = arith.constant dense<0.000000e+00> : vector<2x8x128xf32>
    %33 = tpu.matmul %32, %18, %cst_14 {dimension_numbers = #tpu.dot_dimension_numbers<[2], [1], [1], [2], [0, 0, 0, 1, 1, 2], [0], [0]>} : vector<2x8x8xbf16>, vector<2x8x128xbf16>, vector<2x8x128xf32> -> vector<2x8x128xf32>
    "tpu.trace_stop"() : () -> ()
    %34 = vector.shape_cast %33 : vector<2x8x128xf32> to vector<16x128xf32>
    %35 = arith.truncf %34 : vector<16x128xf32> to vector<16x128xbf16>
    %c0_15 = arith.constant 0 : index
    %c0_16 = arith.constant 0 : index
    %36 = vector.load %arg8[%c0_15, %c0_16] : memref<128x128xbf16, #tpu.memory_space<vmem>>, vector<128x128xbf16>
    %cst_17 = arith.constant dense<0.000000e+00> : vector<16x128xf32>
    %37 = tpu.matmul %35, %36, %cst_17 {dimension_numbers = #tpu.dot_dimension_numbers<[1], [0], [0], [1], [0, 0, 1, 1], [], []>} : vector<16x128xbf16>, vector<128x128xbf16>, vector<16x128xf32> -> vector<16x128xf32>
    %38 = arith.addf %6, %37 : vector<16x128xf32>
    %39 = arith.truncf %38 : vector<16x128xf32> to vector<16x128xbf16>
    %c0_18 = arith.constant 0 : index
    %c0_19 = arith.constant 0 : index
    %40 = vector.load %arg9[%c0_18, %c0_19] : memref<128x128xbf16, #tpu.memory_space<vmem>>, vector<128x128xbf16>
    %cst_20 = arith.constant dense<0.000000e+00> : vector<16x128xf32>
    %41 = tpu.matmul %39, %40, %cst_20 {dimension_numbers = #tpu.dot_dimension_numbers<[1], [0], [0], [1], [0, 0, 1, 1], [], []>} : vector<16x128xbf16>, vector<128x128xbf16>, vector<16x128xf32> -> vector<16x128xf32>
    %cst_21 = arith.constant 0.000000e+00 : f32
    %42 = vector.broadcast %cst_21 : f32 to vector<16x128xf32>
    %43 = arith.maximumf %41, %42 : vector<16x128xf32>
    %44 = arith.truncf %43 : vector<16x128xf32> to vector<16x128xbf16>
    %c0_22 = arith.constant 0 : index
    %c0_23 = arith.constant 0 : index
    %45 = vector.load %arg10[%c0_22, %c0_23] : memref<128x128xbf16, #tpu.memory_space<vmem>>, vector<128x128xbf16>
    %cst_24 = arith.constant dense<0.000000e+00> : vector<16x128xf32>
    %46 = tpu.matmul %44, %45, %cst_24 {dimension_numbers = #tpu.dot_dimension_numbers<[1], [0], [0], [1], [0, 0, 1, 1], [], []>} : vector<16x128xbf16>, vector<128x128xbf16>, vector<16x128xf32> -> vector<16x128xf32>
    %47 = arith.addf %38, %46 : vector<16x128xf32>
    %c2_i32 = arith.constant 2 : i32
    %48 = arith.cmpi slt, %arg1, %c2_i32 : i32
    %49 = arith.extui %48 : i1 to i32
    %c0_i32_25 = arith.constant 0 : i32
    %50 = arith.cmpi ne, %49, %c0_i32_25 : i32
    scf.if %50 {
      %54 = vector.shape_cast %47 : vector<16x128xf32> to vector<2x8x128xf32>
      %c0_28 = arith.constant 0 : index
      %c0_29 = arith.constant 0 : index
      %c0_30 = arith.constant 0 : index
      %55 = vector.load %arg15[%c0_28, %c0_29, %c0_30] : memref<2x8x128xf32, #tpu.memory_space<vmem>>, vector<2x8x128xf32>
      tpu.vector_store %arg15[%c0_28, %c0_29, %c0_30], %54 {strides = array<i32>} : memref<2x8x128xf32, #tpu.memory_space<vmem>>, vector<2x8x128xf32>,
      %c2_i32_31 = arith.constant 2 : i32
      %56 = arith.muli %arg1, %c2_i32_31 : i32
      %c2_i32_32 = arith.constant 2 : i32
      %57 = arith.muli %arg0, %c2_i32_32 : i32
      %58 = arith.addi %56, %57 : i32
      %c0_i32_33 = arith.constant 0 : i32
      %59 = arith.addi %58, %c0_i32_33 : i32
      %60 = arith.index_cast %59 : i32 to index
      %61 = memref.load %arg2[%60] : memref<6xi32, #tpu.memory_space<smem>>
      %c0_i32_34 = arith.constant 0 : i32
      %62 = arith.cmpi sgt, %61, %c0_i32_34 : i32
      %63 = arith.extui %62 : i1 to i32
      %c0_i32_35 = arith.constant 0 : i32
      %c0_i32_36 = arith.constant 0 : i32
      %c0_i32_37 = arith.constant 0 : i32
      %64 = arith.cmpi ne, %63, %c0_i32_37 : i32
      scf.if %64 {
        %c1_i32_44 = arith.constant 1 : i32
        %74 = arith.subi %61, %c1_i32_44 : i32
        %c0_i32_45 = arith.constant 0 : i32
        %c0_i32_46 = arith.constant 0 : i32
        %75 = tpu.memref_slice %arg15[%c0_i32_35, %c0_i32_45, %c0_i32_46] : memref<2x8x128xf32, #tpu.memory_space<vmem>> -> memref<1x8x128xf32, #tpu.memory_space<vmem>>
        %76 = tpu.memref_squeeze %75 : memref<1x8x128xf32, #tpu.memory_space<vmem>> -> memref<8x128xf32, #tpu.memory_space<vmem>>
        %77 = arith.index_cast %74 : i32 to index
        %c0_47 = arith.constant 0 : index
        %78 = vector.load %76[%77, %c0_47] : memref<8x128xf32, #tpu.memory_space<vmem>>, vector<1x128xf32>
        %c0_i32_48 = arith.constant 0 : i32
        %c0_i32_49 = arith.constant 0 : i32
        %79 = tpu.memref_slice %arg12[%c0_i32_36, %c0_i32_48, %c0_i32_49] : memref<2x8x128xf32, #tpu.memory_space<vmem>> -> memref<1x8x128xf32, #tpu.memory_space<vmem>>
        %80 = tpu.memref_squeeze %79 : memref<1x8x128xf32, #tpu.memory_space<vmem>> -> memref<8x128xf32, #tpu.memory_space<vmem>>
        %81 = arith.index_cast %61 : i32 to index
        %c0_50 = arith.constant 0 : index
        %82 = vector.load %80[%81, %c0_50] : memref<8x128xf32, #tpu.memory_space<vmem>>, vector<1x128xf32>
        tpu.vector_store %80[%81, %c0_50], %78 {strides = array<i32>} : memref<8x128xf32, #tpu.memory_space<vmem>>, vector<1x128xf32>,
      } else {
      }
      %c2_i32_38 = arith.constant 2 : i32
      %65 = arith.muli %arg1, %c2_i32_38 : i32
      %c2_i32_39 = arith.constant 2 : i32
      %66 = arith.muli %arg0, %c2_i32_39 : i32
      %67 = arith.addi %65, %66 : i32
      %c1_i32 = arith.constant 1 : i32
      %68 = arith.addi %67, %c1_i32 : i32
      %69 = arith.index_cast %68 : i32 to index
      %70 = memref.load %arg2[%69] : memref<6xi32, #tpu.memory_space<smem>>
      %c0_i32_40 = arith.constant 0 : i32
      %71 = arith.cmpi sgt, %70, %c0_i32_40 : i32
      %72 = arith.extui %71 : i1 to i32
      %c1_i32_41 = arith.constant 1 : i32
      %c1_i32_42 = arith.constant 1 : i32
      %c0_i32_43 = arith.constant 0 : i32
      %73 = arith.cmpi ne, %72, %c0_i32_43 : i32
      scf.if %73 {
        %c1_i32_44 = arith.constant 1 : i32
        %74 = arith.subi %70, %c1_i32_44 : i32
        %c0_i32_45 = arith.constant 0 : i32
        %c0_i32_46 = arith.constant 0 : i32
        %75 = tpu.memref_slice %arg15[%c1_i32_41, %c0_i32_45, %c0_i32_46] : memref<2x8x128xf32, #tpu.memory_space<vmem>> -> memref<1x8x128xf32, #tpu.memory_space<vmem>>
        %76 = tpu.memref_squeeze %75 : memref<1x8x128xf32, #tpu.memory_space<vmem>> -> memref<8x128xf32, #tpu.memory_space<vmem>>
        %77 = arith.index_cast %74 : i32 to index
        %c0_47 = arith.constant 0 : index
        %78 = vector.load %76[%77, %c0_47] : memref<8x128xf32, #tpu.memory_space<vmem>>, vector<1x128xf32>
        %c0_i32_48 = arith.constant 0 : i32
        %c0_i32_49 = arith.constant 0 : i32
        %79 = tpu.memref_slice %arg12[%c1_i32_42, %c0_i32_48, %c0_i32_49] : memref<2x8x128xf32, #tpu.memory_space<vmem>> -> memref<1x8x128xf32, #tpu.memory_space<vmem>>
        %80 = tpu.memref_squeeze %79 : memref<1x8x128xf32, #tpu.memory_space<vmem>> -> memref<8x128xf32, #tpu.memory_space<vmem>>
        %81 = arith.index_cast %70 : i32 to index
        %c0_50 = arith.constant 0 : index
        %82 = vector.load %80[%81, %c0_50] : memref<8x128xf32, #tpu.memory_space<vmem>>, vector<1x128xf32>
        tpu.vector_store %80[%81, %c0_50], %78 {strides = array<i32>} : memref<8x128xf32, #tpu.memory_space<vmem>>, vector<1x128xf32>,
      } else {
      }
    } else {
    }
    %c2_i32_26 = arith.constant 2 : i32
    %51 = arith.cmpi eq, %arg1, %c2_i32_26 : i32
    %52 = arith.extui %51 : i1 to i32
    %c0_i32_27 = arith.constant 0 : i32
    %53 = arith.cmpi ne, %52, %c0_i32_27 : i32
    scf.if %53 {
      %54 = arith.truncf %47 : vector<16x128xf32> to vector<16x128xbf16>
      %c0_28 = arith.constant 0 : index
      %c0_29 = arith.constant 0 : index
      %55 = vector.load %arg11[%c0_28, %c0_29] : memref<128x128xbf16, #tpu.memory_space<vmem>>, vector<128x128xbf16>
      %cst_30 = arith.constant dense<0.000000e+00> : vector<16x128xf32>
      %56 = tpu.matmul %54, %55, %cst_30 {dimension_numbers = #tpu.dot_dimension_numbers<[1], [0], [0], [1], [0, 0, 1, 1], [], []>} : vector<16x128xbf16>, vector<128x128xbf16>, vector<16x128xf32> -> vector<16x128xf32>
      %57 = vector.shape_cast %56 : vector<16x128xf32> to vector<2x8x128xf32>
      %c0_31 = arith.constant 0 : index
      %c0_32 = arith.constant 0 : index
      %c0_33 = arith.constant 0 : index
      %58 = vector.load %arg13[%c0_31, %c0_32, %c0_33] : memref<2x8x128xf32, #tpu.memory_space<vmem>>, vector<2x8x128xf32>
      tpu.vector_store %arg13[%c0_31, %c0_32, %c0_33], %57 {strides = array<i32>} : memref<2x8x128xf32, #tpu.memory_space<vmem>>, vector<2x8x128xf32>,
      %c0_34 = arith.constant 0 : index
      %c0_35 = arith.constant 0 : index
      %c0_36 = arith.constant 0 : index
      %59 = vector.load %arg6[%c0_34, %c0_35, %c0_36] : memref<2x8x1xi32, #tpu.memory_space<vmem>>, vector<2x8x1xi32>
      %60 = vector.shape_cast %59 : vector<2x8x1xi32> to vector<16x1xi32>
      %61 = tpu.iota {dimensions = array<i32: 1>} : vector<16x128xi32>
      %c64_i32 = arith.constant 64 : i32
      %62 = vector.broadcast %c64_i32 : i32 to vector<16x128xi32>
      %63 = arith.cmpi slt, %61, %62 : vector<16x128xi32>
      %cst_37 = arith.constant -1.000000e+30 : f32
      %64 = vector.broadcast %cst_37 : f32 to vector<16x128xf32>
      %65 = arith.select %63, %56, %64 : vector<16x128xi1>, vector<16x128xf32>
      %cst_38 = arith.constant dense<0xFF800000> : vector<16xf32>
      %66 = vector.multi_reduction <maximumf>, %65, %cst_38 [1] : vector<16x128xf32> to vector<16xf32>
      %67 = vector.shape_cast %66 : vector<16xf32> to vector<16x1xf32>
      %68 = vector.broadcast %67 : vector<16x1xf32> to vector<16x128xf32>
      %69 = arith.subf %65, %68 : vector<16x128xf32>
      %70 = math.exp %69 : vector<16x128xf32>
      %cst_39 = arith.constant dense<0.000000e+00> : vector<16xf32>
      %71 = vector.multi_reduction <add>, %70, %cst_39 [1] : vector<16x128xf32> to vector<16xf32>
      %72 = vector.shape_cast %71 : vector<16xf32> to vector<16x1xf32>
      %73 = math.log %72 : vector<16x1xf32>
      %74 = arith.addf %67, %73 : vector<16x1xf32>
      %75 = vector.broadcast %60 : vector<16x1xi32> to vector<16x128xi32>
      %76 = arith.cmpi eq, %61, %75 : vector<16x128xi32>
      %cst_40 = arith.constant 0.000000e+00 : f32
      %77 = vector.broadcast %cst_40 : f32 to vector<16x128xf32>
      %78 = arith.select %76, %65, %77 : vector<16x128xi1>, vector<16x128xf32>
      %cst_41 = arith.constant dense<0.000000e+00> : vector<16xf32>
      %79 = vector.multi_reduction <add>, %78, %cst_41 [1] : vector<16x128xf32> to vector<16xf32>
      %80 = vector.shape_cast %79 : vector<16xf32> to vector<16x1xf32>
      %c-100_i32 = arith.constant -100 : i32
      %81 = vector.broadcast %c-100_i32 : i32 to vector<16x1xi32>
      %82 = arith.cmpi ne, %60, %81 : vector<16x1xi32>
      %83 = arith.subf %74, %80 : vector<16x1xf32>
      %cst_42 = arith.constant 0.000000e+00 : f32
      %84 = vector.broadcast %cst_42 : f32 to vector<16x1xf32>
      %85 = arith.select %82, %83, %84 : vector<16x1xi1>, vector<16x1xf32>
      %cst_43 = arith.constant dense<0.000000e+00> : vector<1xf32>
      %86 = vector.multi_reduction <add>, %85, %cst_43 [0] : vector<16x1xf32> to vector<1xf32>
      %87 = vector.shape_cast %86 : vector<1xf32> to vector<1x1xf32>
      %88 = vector.shape_cast %87 : vector<1x1xf32> to vector<1x1x1xf32>
      %89 = arith.extui %82 : vector<16x1xi1> to vector<16x1xi32>
      %90 = arith.sitofp %89 : vector<16x1xi32> to vector<16x1xf32>
      %cst_44 = arith.constant dense<0.000000e+00> : vector<1xf32>
      %91 = vector.multi_reduction <add>, %90, %cst_44 [0] : vector<16x1xf32> to vector<1xf32>
      %92 = vector.shape_cast %91 : vector<1xf32> to vector<1x1xf32>
      %93 = vector.shape_cast %92 : vector<1x1xf32> to vector<1x1x1xf32>
      %94 = tpu.iota {dimensions = array<i32: 2>} : vector<1x1x128xi32>
      %c0_i32_45 = arith.constant 0 : i32
      %95 = vector.broadcast %c0_i32_45 : i32 to vector<1x1x128xi32>
      %96 = arith.cmpi eq, %94, %95 : vector<1x1x128xi32>
      %cst_46 = arith.constant 0.000000e+00 : f32
      %97 = vector.shape_cast %88 : vector<1x1x1xf32> to vector<1x1x1xf32>
      %98 = vector.broadcast %97 : vector<1x1x1xf32> to vector<1x1x128xf32>
      %99 = vector.broadcast %cst_46 : f32 to vector<1x1x128xf32>
      %100 = arith.select %96, %98, %99 : vector<1x1x128xi1>, vector<1x1x128xf32>
      %c1_i32 = arith.constant 1 : i32
      %101 = vector.broadcast %c1_i32 : i32 to vector<1x1x128xi32>
      %102 = arith.cmpi eq, %94, %101 : vector<1x1x128xi32>
      %cst_47 = arith.constant 0.000000e+00 : f32
      %103 = vector.shape_cast %93 : vector<1x1x1xf32> to vector<1x1x1xf32>
      %104 = vector.broadcast %103 : vector<1x1x1xf32> to vector<1x1x128xf32>
      %105 = vector.broadcast %cst_47 : f32 to vector<1x1x128xf32>
      %106 = arith.select %102, %104, %105 : vector<1x1x128xi1>, vector<1x1x128xf32>
      %107 = arith.addf %100, %106 : vector<1x1x128xf32>
      %c0_48 = arith.constant 0 : index
      %c0_49 = arith.constant 0 : index
      %c0_50 = arith.constant 0 : index
      %108 = vector.load %arg14[%c0_48, %c0_49, %c0_50] : memref<1x1x128xf32, #tpu.memory_space<vmem>>, vector<1x1x128xf32>
      tpu.vector_store %arg14[%c0_48, %c0_49, %c0_50], %107 {strides = array<i32>} : memref<1x1x128xf32, #tpu.memory_space<vmem>>, vector<1x1x128xf32>,
    } else {
    }
    return
  }
  func.func @transform_0(%arg0: i32, %arg1: i32, %arg2: memref<6xi32, #tpu.memory_space<smem>>) -> (i32, i32, i32) {
    %c0_i32 = arith.constant 0 : i32
    %c0_i32_0 = arith.constant 0 : i32
    %c0_i32_1 = arith.constant 0 : i32
    return %arg0, %c0_i32, %c0_i32_0 : i32, i32, i32
  }
  func.func @transform_1(%arg0: i32, %arg1: i32, %arg2: memref<6xi32, #tpu.memory_space<smem>>) -> (i32, i32, i32) {
    %c0_i32 = arith.constant 0 : i32
    %c0_i32_0 = arith.constant 0 : i32
    %c0_i32_1 = arith.constant 0 : i32
    return %arg0, %c0_i32, %c0_i32_0 : i32, i32, i32
  }
  func.func @transform_2(%arg0: i32, %arg1: i32, %arg2: memref<6xi32, #tpu.memory_space<smem>>) -> (i32, i32, i32) {
    %c0_i32 = arith.constant 0 : i32
    %c0_i32_0 = arith.constant 0 : i32
    %c0_i32_1 = arith.constant 0 : i32
    return %arg0, %c0_i32, %c0_i32_0 : i32, i32, i32
  }
  func.func @transform_3(%arg0: i32, %arg1: i32, %arg2: memref<6xi32, #tpu.memory_space<smem>>) -> (i32, i32, i32) {
    %c0_i32 = arith.constant 0 : i32
    %c0_i32_0 = arith.constant 0 : i32
    %c0_i32_1 = arith.constant 0 : i32
    return %arg0, %c0_i32, %c0_i32_0 : i32, i32, i32
  }
  func.func @transform_4(%arg0: i32, %arg1: i32, %arg2: memref<6xi32, #tpu.memory_space<smem>>) -> (i32, i32) {
    %c0_i32 = arith.constant 0 : i32
    %c0_i32_0 = arith.constant 0 : i32
    %c0_i32_1 = arith.constant 0 : i32
    return %c0_i32, %c0_i32_0 : i32, i32
  }
  func.func @transform_5(%arg0: i32, %arg1: i32, %arg2: memref<6xi32, #tpu.memory_space<smem>>) -> (i32, i32) {
    %c0_i32 = arith.constant 0 : i32
    %c0_i32_0 = arith.constant 0 : i32
    %c0_i32_1 = arith.constant 0 : i32
    return %c0_i32, %c0_i32_0 : i32, i32
  }
  func.func @transform_6(%arg0: i32, %arg1: i32, %arg2: memref<6xi32, #tpu.memory_space<smem>>) -> (i32, i32) {
    %c0_i32 = arith.constant 0 : i32
    %c0_i32_0 = arith.constant 0 : i32
    %c0_i32_1 = arith.constant 0 : i32
    return %c0_i32, %c0_i32_0 : i32, i32
  }
  func.func @transform_7(%arg0: i32, %arg1: i32, %arg2: memref<6xi32, #tpu.memory_space<smem>>) -> (i32, i32) {
    %c0_i32 = arith.constant 0 : i32
    %c0_i32_0 = arith.constant 0 : i32
    %c0_i32_1 = arith.constant 0 : i32
    return %c0_i32, %c0_i32_0 : i32, i32
  }
  func.func @transform_8(%arg0: i32, %arg1: i32, %arg2: memref<6xi32, #tpu.memory_space<smem>>) -> (i32, i32) {
    %c0_i32 = arith.constant 0 : i32
    %c0_i32_0 = arith.constant 0 : i32
    %c0_i32_1 = arith.constant 0 : i32
    return %c0_i32, %c0_i32_0 : i32, i32
  }
  func.func @transform_9(%arg0: i32, %arg1: i32, %arg2: memref<6xi32, #tpu.memory_space<smem>>) -> (i32, i32, i32) {
    %c0_i32 = arith.constant 0 : i32
    %c0_i32_0 = arith.constant 0 : i32
    %c0_i32_1 = arith.constant 0 : i32
    return %arg0, %c0_i32, %c0_i32_0 : i32, i32, i32
  }
  func.func @transform_10(%arg0: i32, %arg1: i32, %arg2: memref<6xi32, #tpu.memory_space<smem>>) -> (i32, i32, i32) {
    %c0_i32 = arith.constant 0 : i32
    %c0_i32_0 = arith.constant 0 : i32
    %c0_i32_1 = arith.constant 0 : i32
    return %arg0, %c0_i32, %c0_i32_0 : i32, i32, i32
  }
  func.func @transform_11(%arg0: i32, %arg1: i32, %arg2: memref<6xi32, #tpu.memory_space<smem>>) -> (i32, i32, i32) {
    %c0_i32 = arith.constant 0 : i32
    %c0_i32_0 = arith.constant 0 : i32
    %c0_i32_1 = arith.constant 0 : i32
    return %arg0, %c0_i32, %c0_i32_0 : i32, i32, i32
  }
}

</mosaic_0001>

<llo_original>
// kernel: tpu_custom_call.1
$region0: #{tpu_custom_call.1}
  #allocation0 [shape = 'u32[]', space=smem, size = 0x4, offset = 0x4, fixed_abs, tag = 'smem constant byte address 0x4 - core index']
  #allocation1 [shape = 'u32[72,128]{1,0:T(1,128)}', space=vmem, size = 0x9000, scoped, tag = 'internal scratch']
  #allocation2 [shape = 'f32[2,8,128]{2,1,0:T(8,128)}', space=vmem, size = 0x2000, scoped, tag = 'scratch operand']
  #allocation3 [shape = 's32[1]{0}', space=sflag, size = 0x4, scoped, tag = 'scoped memory for tpu_custom_call.1']
  #allocation4 [shape = 'u8[512]{0}', space=smem, size = 0x200, scoped, tag = 'prefetched SMEM operand 0']
  %s0 = inlined_call_operand.vmem [shape: s32[6], index: 0, kind: input, shape index: {}]
  %s1 = inlined_call_operand.vmem [shape: f32[2,8,128], index: 1, kind: input, shape index: {}]
  %s2 = inlined_call_operand.hbm [shape: f32[2,8,128], index: 2, kind: input, shape index: {}]
  %s3 = inlined_call_operand.hbm [shape: f32[2,8,8], index: 3, kind: input, shape index: {}]
  %s4 = inlined_call_operand.vmem [shape: s32[2,8,1], index: 4, kind: input, shape index: {}]
  %s5 = inlined_call_operand.hbm [shape: bf16[128,384], index: 5, kind: input, shape index: {}]
  %s6 = inlined_call_operand.hbm [shape: bf16[128,128], index: 6, kind: input, shape index: {}]
  %s7 = inlined_call_operand.hbm [shape: bf16[128,128], index: 7, kind: input, shape index: {}]
  %s8 = inlined_call_operand.hbm [shape: bf16[128,128], index: 8, kind: input, shape index: {}]
  %s9 = inlined_call_operand.hbm [shape: bf16[128,128], index: 9, kind: input, shape index: {}]
  %s10 = inlined_call_operand.hbm [shape: f32[2,8,128], index: 10, kind: output, shape index: {0}]
  %s11 = inlined_call_operand.hbm [shape: f32[2,8,128], index: 11, kind: output, shape index: {1}]
  %s12 = inlined_call_operand.hbm [shape: f32[1,1,128], index: 12, kind: output, shape index: {2}]
  %13 = xla_tuple %s10, %s11, %s12
  %s14 = sld [smem:[#allocation0]]
  $region133: #{tpu_custom_call.1} parent=0
    _
  %s16 = ssub.s32 1, %s14
  %s17 = scalar_select 0, %s16, %s14
  %s19 = sshll.u32 %s0, 4
  %s20 = int_to_ptr.vmem [resolvable:$true] %s19
  %22 = dma.vmem_to_smem %s20, 16, [#allocation4], [#allocation3]
  %24 = dma.done [#allocation3], 16
  %25 = sfence
  $region1: #{tpu_custom_call.1} parent=0
    #allocation5 [shape = 'u8[8192]{0}', space=vmem, size = 0x2000, scoped, tag = 'input window, operand 2, single buffered']
    #allocation6 [shape = 's32[2]{0}', space=sflag, size = 0x8, scoped, tag = 'scoped memory for tpu_custom_call.1']
    #allocation7 [shape = 's32[2]{0}', space=sflag, size = 0x8, scoped, tag = 'scoped memory for tpu_custom_call.1']
    #allocation8 [shape = 'u8[8192]{0}', space=vmem, size = 0x2000, scoped, tag = 'input window, operand 3, single buffered']
    #allocation9 [shape = 's32[1]{0}', space=sflag, size = 0x4, scoped, tag = 'scoped memory for tpu_custom_call.1']
    #allocation10 [shape = 'u8[98304]{0}', space=vmem, size = 0x18000, scoped, tag = 'input window, operand 5, single buffered']
    #allocation11 [shape = 'u8[32768]{0}', space=vmem, size = 0x8000, scoped, tag = 'input window, operand 6, single buffered']
    #allocation12 [shape = 's32[1]{0}', space=sflag, size = 0x4, scoped, tag = 'scoped memory for tpu_custom_call.1']
    #allocation13 [shape = 'u8[32768]{0}', space=vmem, size = 0x8000, scoped, tag = 'input window, operand 7, single buffered']
    #allocation14 [shape = 'u8[32768]{0}', space=vmem, size = 0x8000, scoped, tag = 'input window, operand 8, single buffered']
    #allocation15 [shape = 's32[1]{0}', space=sflag, size = 0x4, scoped, tag = 'scoped memory for tpu_custom_call.1']
    #allocation16 [shape = 'u8[32768]{0}', space=vmem, size = 0x8000, scoped, tag = 'input window, operand 9, single buffered']
    #allocation17 [shape = 'u8[8192]{0}', space=vmem, size = 0x2000, scoped, tag = 'output window, operand 0, single buffered']
    #allocation18 [shape = 'u8[8192]{0}', space=vmem, size = 0x2000, scoped, tag = 'output window, operand 1, single buffered']
    #allocation19 [shape = 's32[1]{0}', space=sflag, size = 0x4, scoped, tag = 'scoped memory for tpu_custom_call.1']
    #allocation20 [shape = 'u8[512]{0}', space=vmem, size = 0x400, scoped, tag = 'output window, operand 2, single buffered']
    %26 = vsyncpa [#allocation6], 0
    %27 = vsyncpa [#allocation9], 0
    %28 = vsyncpa [#allocation12], 0
    %29 = vsyncpa [#allocation15], 0
    %30 = vsyncpa [#allocation7], 0
    %31 = vsyncpa [#allocation19], 0
    loop: start=0, step=1, limit=5
    $region2: #{tpu_custom_call.1} parent=1 // loop_pre_header
      _
    $region3: #{tpu_custom_call.1} parent=1 // loop_header
      %s33 = sphi 0, %s37
      %p34 = scmp.ge.s32.totalorder %s33, 5
      %s40 = sphi 0, %s52
      %s41 = sphi 0, %s48
      %s42 = sphi 0, %s40
      %s43 = sphi 0, %s41
      %s44 = sphi 0, %s42
      %s45 = sphi 0, %s43
      %s55 = sphi 0, %s57
      %s58 = sphi 0, %s55
      %s59 = sphi 0, %s58
      %s75 = sphi 0, %s59
      %s81 = sphi 0, %s83
      %s84 = sphi 0, %s81
      %s85 = sphi 0, %s84
      %s101 = sphi 0, %s85
      %s107 = sphi 0, %s109
      %s110 = sphi 0, %s107
      %s111 = sphi 0, %s110
      %s127 = sphi 0, %s111
      %s133 = sphi 0, %s135
      %s136 = sphi 0, %s133
      %s137 = sphi 0, %s136
      %s153 = sphi 0, %s137
      %s157 = sphi 0, %s157
      %s159 = sphi 0, %s157
      %s160 = sphi 0, %s159
      %s174 = sphi 0, %s160
      %s178 = sphi 0, %s178
      %s180 = sphi 0, %s178
      %s181 = sphi 0, %s180
      %s195 = sphi 0, %s181
      %s199 = sphi 0, %s199
      %s201 = sphi 0, %s199
      %s202 = sphi 0, %s201
      %s216 = sphi 0, %s202
      %s220 = sphi 0, %s220
      %s222 = sphi 0, %s220
      %s223 = sphi 0, %s222
      %s237 = sphi 0, %s223
      %s241 = sphi 0, %s241
      %s243 = sphi 0, %s241
      %s244 = sphi 0, %s243
      %s258 = sphi 0, %s244
      %s264 = sphi 0, %s266
      %s267 = sphi 0, %s264
      %s268 = sphi 0, %s267
      %s284 = sphi 0, %s268
      %s290 = sphi 0, %s292
      %s293 = sphi 0, %s290
      %s294 = sphi 0, %s293
      %s310 = sphi 0, %s294
      %s316 = sphi 0, %s318
      %s319 = sphi 0, %s316
      %s320 = sphi 0, %s319
      %s336 = sphi 0, %s320
    $region4: #{tpu_custom_call.1} parent=1 // loop_header_branch
      %36 = sbr.rel (%p34) target = $region8
    $region5: #{tpu_custom_call.1} parent=1 // loop_body
      %s38 = ssub.s32 %s33, 1
      %s39 = ssub.s32 %s33, 2
      %s46 = sadd.s32 1, %s41
      %p47 = scmp.ge.s32.totalorder %s46, 3
      %s48 = scalar_select %p47, 0, %s46
      %s49 = sadd.s32 1, %s40
      %s50 = scalar_select %p47, %s49, %s40
      %p51 = scmp.ge.s32.totalorder %s50, 1
      %s52 = scalar_select %p51, 0, %s50
      %s53 = ssub.s32 %s40, %s52
      %p54 = scmp.eq.s32.totalorder %s53, 0
      %s56 = sadd.s32 %s55, 1
      %s57 = scalar_select %p54, %s55, %s56
      %p60 = pneg %p54
      %p61 = scmp.eq.s32.totalorder %s33, 2
      %p62 = por %p60, %p61
      %p63 = scmp.ne.s32.totalorder %s55, %s58
      %p64 = scmp.eq.s32.totalorder %s33, 0
      %p65 = por %p63, %p64
      %p66 = scmp.ne.s32.totalorder %s55, %s58
      %p67 = scmp.eq.s32.totalorder %s38, 2
      %p68 = por %p66, %p67
      %p69 = scmp.ne.s32.totalorder %s58, %s59
      %p70 = scmp.eq.s32.totalorder %s38, 0
      %p71 = por %p69, %p70
      %p72 = scmp.ne.s32.totalorder %s58, %s59
      %p73 = scmp.eq.s32.totalorder %s39, 2
      %p74 = por %p72, %p73
      %p76 = scmp.ne.s32.totalorder %s59, %s75
      %p77 = scmp.eq.s32.totalorder %s39, 0
      %p78 = por %p76, %p77
      %s79 = ssub.s32 %s40, %s52
      %p80 = scmp.eq.s32.totalorder %s79, 0
      %s82 = sadd.s32 %s81, 1
      %s83 = scalar_select %p80, %s81, %s82
      %p86 = pneg %p80
      %p87 = scmp.eq.s32.totalorder %s33, 2
      %p88 = por %p86, %p87
      %p89 = scmp.ne.s32.totalorder %s81, %s84
      %p90 = scmp.eq.s32.totalorder %s33, 0
      %p91 = por %p89, %p90
      %p92 = scmp.ne.s32.totalorder %s81, %s84
      %p93 = scmp.eq.s32.totalorder %s38, 2
      %p94 = por %p92, %p93
      %p95 = scmp.ne.s32.totalorder %s84, %s85
      %p96 = scmp.eq.s32.totalorder %s38, 0
      %p97 = por %p95, %p96
      %p98 = scmp.ne.s32.totalorder %s84, %s85
      %p99 = scmp.eq.s32.totalorder %s39, 2
      %p100 = por %p98, %p99
      %p102 = scmp.ne.s32.totalorder %s85, %s101
      %p103 = scmp.eq.s32.totalorder %s39, 0
      %p104 = por %p102, %p103
      %s105 = ssub.s32 %s40, %s52
      %p106 = scmp.eq.s32.totalorder %s105, 0
      %s108 = sadd.s32 %s107, 1
      %s109 = scalar_select %p106, %s107, %s108
      %p112 = pneg %p106
      %p113 = scmp.eq.s32.totalorder %s33, 2
      %p114 = por %p112, %p113
      %p115 = scmp.ne.s32.totalorder %s107, %s110
      %p116 = scmp.eq.s32.totalorder %s33, 0
      %p117 = por %p115, %p116
      %p118 = scmp.ne.s32.totalorder %s107, %s110
      %p119 = scmp.eq.s32.totalorder %s38, 2
      %p120 = por %p118, %p119
      %p121 = scmp.ne.s32.totalorder %s110, %s111
      %p122 = scmp.eq.s32.totalorder %s38, 0
      %p123 = por %p121, %p122
      %p124 = scmp.ne.s32.totalorder %s110, %s111
      %p125 = scmp.eq.s32.totalorder %s39, 2
      %p126 = por %p124, %p125
      %p128 = scmp.ne.s32.totalorder %s111, %s127
      %p129 = scmp.eq.s32.totalorder %s39, 0
      %p130 = por %p128, %p129
      %s131 = ssub.s32 %s40, %s52
      %p132 = scmp.eq.s32.totalorder %s131, 0
      %s134 = sadd.s32 %s133, 1
      %s135 = scalar_select %p132, %s133, %s134
      %p138 = pneg %p132
      %p139 = scmp.eq.s32.totalorder %s33, 2
      %p140 = por %p138, %p139
      %p141 = scmp.ne.s32.totalorder %s133, %s136
      %p142 = scmp.eq.s32.totalorder %s33, 0
      %p143 = por %p141, %p142
      %p144 = scmp.ne.s32.totalorder %s133, %s136
      %p145 = scmp.eq.s32.totalorder %s38, 2
      %p146 = por %p144, %p145
      %p147 = scmp.ne.s32.totalorder %s136, %s137
      %p148 = scmp.eq.s32.totalorder %s38, 0
      %p149 = por %p147, %p148
      %p150 = scmp.ne.s32.totalorder %s136, %s137
      %p151 = scmp.eq.s32.totalorder %s39, 2
      %p152 = por %p150, %p151
      %p154 = scmp.ne.s32.totalorder %s137, %s153
      %p155 = scmp.eq.s32.totalorder %s39, 0
      %p156 = por %p154, %p155
      %s158 = sadd.s32 %s157, 1
      %p161 = scmp.eq.s32.totalorder %s33, 2
      %p162 = scmp.ne.s32.totalorder %s157, %s159
      %p163 = scmp.eq.s32.totalorder %s33, 0
      %p164 = por %p162, %p163
      %p165 = scmp.ne.s32.totalorder %s157, %s159
      %p166 = scmp.eq.s32.totalorder %s38, 2
      %p167 = por %p165, %p166
      %p168 = scmp.ne.s32.totalorder %s159, %s160
      %p169 = scmp.eq.s32.totalorder %s38, 0
      %p170 = por %p168, %p169
      %p171 = scmp.ne.s32.totalorder %s159, %s160
      %p172 = scmp.eq.s32.totalorder %s39, 2
      %p173 = por %p171, %p172
      %p175 = scmp.ne.s32.totalorder %s160, %s174
      %p176 = scmp.eq.s32.totalorder %s39, 0
      %p177 = por %p175, %p176
      %s179 = sadd.s32 %s178, 1
      %p182 = scmp.eq.s32.totalorder %s33, 2
      %p183 = scmp.ne.s32.totalorder %s178, %s180
      %p184 = scmp.eq.s32.totalorder %s33, 0
      %p185 = por %p183, %p184
      %p186 = scmp.ne.s32.totalorder %s178, %s180
      %p187 = scmp.eq.s32.totalorder %s38, 2
      %p188 = por %p186, %p187
      %p189 = scmp.ne.s32.totalorder %s180, %s181
      %p190 = scmp.eq.s32.totalorder %s38, 0
      %p191 = por %p189, %p190
      %p192 = scmp.ne.s32.totalorder %s180, %s181
      %p193 = scmp.eq.s32.totalorder %s39, 2
      %p194 = por %p192, %p193
      %p196 = scmp.ne.s32.totalorder %s181, %s195
      %p197 = scmp.eq.s32.totalorder %s39, 0
      %p198 = por %p196, %p197
      %s200 = sadd.s32 %s199, 1
      %p203 = scmp.eq.s32.totalorder %s33, 2
      %p204 = scmp.ne.s32.totalorder %s199, %s201
      %p205 = scmp.eq.s32.totalorder %s33, 0
      %p206 = por %p204, %p205
      %p207 = scmp.ne.s32.totalorder %s199, %s201
      %p208 = scmp.eq.s32.totalorder %s38, 2
      %p209 = por %p207, %p208
      %p210 = scmp.ne.s32.totalorder %s201, %s202
      %p211 = scmp.eq.s32.totalorder %s38, 0
      %p212 = por %p210, %p211
      %p213 = scmp.ne.s32.totalorder %s201, %s202
      %p214 = scmp.eq.s32.totalorder %s39, 2
      %p215 = por %p213, %p214
      %p217 = scmp.ne.s32.totalorder %s202, %s216
      %p218 = scmp.eq.s32.totalorder %s39, 0
      %p219 = por %p217, %p218
      %s221 = sadd.s32 %s220, 1
      %p224 = scmp.eq.s32.totalorder %s33, 2
      %p225 = scmp.ne.s32.totalorder %s220, %s222
      %p226 = scmp.eq.s32.totalorder %s33, 0
      %p227 = por %p225, %p226
      %p228 = scmp.ne.s32.totalorder %s220, %s222
      %p229 = scmp.eq.s32.totalorder %s38, 2
      %p230 = por %p228, %p229
      %p231 = scmp.ne.s32.totalorder %s222, %s223
      %p232 = scmp.eq.s32.totalorder %s38, 0
      %p233 = por %p231, %p232
      %p234 = scmp.ne.s32.totalorder %s222, %s223
      %p235 = scmp.eq.s32.totalorder %s39, 2
      %p236 = por %p234, %p235
      %p238 = scmp.ne.s32.totalorder %s223, %s237
      %p239 = scmp.eq.s32.totalorder %s39, 0
      %p240 = por %p238, %p239
      %s242 = sadd.s32 %s241, 1
      %p245 = scmp.eq.s32.totalorder %s33, 2
      %p246 = scmp.ne.s32.totalorder %s241, %s243
      %p247 = scmp.eq.s32.totalorder %s33, 0
      %p248 = por %p246, %p247
      %p249 = scmp.ne.s32.totalorder %s241, %s243
      %p250 = scmp.eq.s32.totalorder %s38, 2
      %p251 = por %p249, %p250
      %p252 = scmp.ne.s32.totalorder %s243, %s244
      %p253 = scmp.eq.s32.totalorder %s38, 0
      %p254 = por %p252, %p253
      %p255 = scmp.ne.s32.totalorder %s243, %s244
      %p256 = scmp.eq.s32.totalorder %s39, 2
      %p257 = por %p255, %p256
      %p259 = scmp.ne.s32.totalorder %s244, %s258
      %p260 = scmp.eq.s32.totalorder %s39, 0
      %p261 = por %p259, %p260
      %s262 = ssub.s32 %s40, %s52
      %p263 = scmp.eq.s32.totalorder %s262, 0
      %s265 = sadd.s32 %s264, 1
      %s266 = scalar_select %p263, %s264, %s265
      %p269 = pneg %p263
      %p270 = scmp.eq.s32.totalorder %s33, 2
      %p271 = por %p269, %p270
      %p272 = scmp.ne.s32.totalorder %s264, %s267
      %p273 = scmp.eq.s32.totalorder %s33, 0
      %p274 = por %p272, %p273
      %p275 = scmp.ne.s32.totalorder %s264, %s267
      %p276 = scmp.eq.s32.totalorder %s38, 2
      %p277 = por %p275, %p276
      %p278 = scmp.ne.s32.totalorder %s267, %s268
      %p279 = scmp.eq.s32.totalorder %s38, 0
      %p280 = por %p278, %p279
      %p281 = scmp.ne.s32.totalorder %s267, %s268
      %p282 = scmp.eq.s32.totalorder %s39, 2
      %p283 = por %p281, %p282
      %p285 = scmp.ne.s32.totalorder %s268, %s284
      %p286 = scmp.eq.s32.totalorder %s39, 0
      %p287 = por %p285, %p286
      %s288 = ssub.s32 %s40, %s52
      %p289 = scmp.eq.s32.totalorder %s288, 0
      %s291 = sadd.s32 %s290, 1
      %s292 = scalar_select %p289, %s290, %s291
      %p295 = pneg %p289
      %p296 = scmp.eq.s32.totalorder %s33, 2
      %p297 = por %p295, %p296
      %p298 = scmp.ne.s32.totalorder %s290, %s293
      %p299 = scmp.eq.s32.totalorder %s33, 0
      %p300 = por %p298, %p299
      %p301 = scmp.ne.s32.totalorder %s290, %s293
      %p302 = scmp.eq.s32.totalorder %s38, 2
      %p303 = por %p301, %p302
      %p304 = scmp.ne.s32.totalorder %s293, %s294
      %p305 = scmp.eq.s32.totalorder %s38, 0
      %p306 = por %p304, %p305
      %p307 = scmp.ne.s32.totalorder %s293, %s294
      %p308 = scmp.eq.s32.totalorder %s39, 2
      %p309 = por %p307, %p308
      %p311 = scmp.ne.s32.totalorder %s294, %s310
      %p312 = scmp.eq.s32.totalorder %s39, 0
      %p313 = por %p311, %p312
      %s314 = ssub.s32 %s40, %s52
      %p315 = scmp.eq.s32.totalorder %s314, 0
      %s317 = sadd.s32 %s316, 1
      %s318 = scalar_select %p315, %s316, %s317
      %p321 = pneg %p315
      %p322 = scmp.eq.s32.totalorder %s33, 2
      %p323 = por %p321, %p322
      %p324 = scmp.ne.s32.totalorder %s316, %s319
      %p325 = scmp.eq.s32.totalorder %s33, 0
      %p326 = por %p324, %p325
      %p327 = scmp.ne.s32.totalorder %s316, %s319
      %p328 = scmp.eq.s32.totalorder %s38, 2
      %p329 = por %p327, %p328
      %p330 = scmp.ne.s32.totalorder %s319, %s320
      %p331 = scmp.eq.s32.totalorder %s38, 0
      %p332 = por %p330, %p331
      %p333 = scmp.ne.s32.totalorder %s319, %s320
      %p334 = scmp.eq.s32.totalorder %s39, 2
      %p335 = por %p333, %p334
      %p337 = scmp.ne.s32.totalorder %s320, %s336
      %p338 = scmp.eq.s32.totalorder %s39, 0
      %p339 = por %p337, %p338
      %p340 = scmp.le.s32.totalorder 1, %s33
      %p341 = scmp.lt.s32.totalorder %s33, 4
      %p342 = pnand %p340, %p341
      %p343 = pneg %p342
      // Predicated region
      $region9: #{tpu_custom_call.1} parent=5 // pred_check
        _
      $region10: #{tpu_custom_call.1} parent=5 // pred_check_branch
        %345 = sbr.rel (%p342) target = $region12
      $region11: #{tpu_custom_call.1} parent=5 // pred_region
        %s346 = ssub.s32 %s33, 1
        // Predicated region
        $region13: #{tpu_custom_call.1} parent=11 // pred_check
          %p347 = pneg %p71
        $region14: #{tpu_custom_call.1} parent=11 // pred_check_branch
          %349 = sbr.rel (%p347) target = $region16
        $region15: #{tpu_custom_call.1} parent=11 // pred_region
          %s350 = smul.u32 2, %s42
          %p351 = scmp.lt.s32.totalorder %s350, 1
          %s352 = scalar_select %p351, %s350, 1
          %s353 = smul.addr %s352, 8
          %s354 = scalar_lea.vmem %s1, %s353
          %s355 = smul.u32 2, %s42
        $region16: #{tpu_custom_call.1} parent=11 // pred_fallthru
          _
        // Predicated region
        $region17: #{tpu_custom_call.1} parent=11 // pred_check
          %p356 = pneg %p97
        $region18: #{tpu_custom_call.1} parent=11 // pred_check_branch
          %358 = sbr.rel (%p356) target = $region20
        $region19: #{tpu_custom_call.1} parent=11 // pred_region
          %s359 = smul.u32 2, %s42
          %361 = vsyncadd [#allocation6], 0
          %s362 = smul.addr %s359, 8
          %s363 = scalar_lea.hbm %s2, %s362
          %s364 = sshll.u32 %s363, 4
          %s365 = int_to_ptr.hbm [resolvable:$true] %s364
          %s366 = sshll.u32 [#allocation5], 4
          %s367 = int_to_ptr.vmem [resolvable:$true] %s366
          %372 = dma.hbm_to_vmem [thread:$0]  %s365, 256, %s367, [#allocation6], 128, 128, 8
        $region20: #{tpu_custom_call.1} parent=11 // pred_fallthru
          _
        // Predicated region
        $region21: #{tpu_custom_call.1} parent=11 // pred_check
          %p373 = pneg %p123
        $region22: #{tpu_custom_call.1} parent=11 // pred_check_branch
          %375 = sbr.rel (%p373) target = $region24
        $region23: #{tpu_custom_call.1} parent=11 // pred_region
          %s376 = smul.u32 2, %s42
          %378 = vsyncadd [#allocation9], 0
          %s379 = smul.addr %s376, 8
          %s380 = scalar_lea.hbm %s3, %s379
          %s381 = sshll.u32 %s380, 4
          %s382 = int_to_ptr.hbm [resolvable:$true] %s381
          %s383 = sshll.u32 [#allocation8], 4
          %s384 = int_to_ptr.vmem [resolvable:$true] %s383
          %389 = dma.hbm_to_vmem [thread:$0]  %s382, 256, %s384, [#allocation9], 128, 128, 8
        $region24: #{tpu_custom_call.1} parent=11 // pred_fallthru
          _
        // Predicated region
        $region25: #{tpu_custom_call.1} parent=11 // pred_check
          %p390 = pneg %p149
        $region26: #{tpu_custom_call.1} parent=11 // pred_check_branch
          %392 = sbr.rel (%p390) target = $region28
        $region27: #{tpu_custom_call.1} parent=11 // pred_region
          %s393 = smul.u32 2, %s42
          %p394 = scmp.lt.s32.totalorder %s393, 1
          %s395 = scalar_select %p394, %s393, 1
          %s396 = smul.addr %s395, 8
          %s397 = scalar_lea.vmem %s4, %s396
          %s398 = smul.u32 2, %s42
        $region28: #{tpu_custom_call.1} parent=11 // pred_fallthru
          _
        // Predicated region
        $region29: #{tpu_custom_call.1} parent=11 // pred_check
          %p399 = pneg %p170
        $region30: #{tpu_custom_call.1} parent=11 // pred_check_branch
          %401 = sbr.rel (%p399) target = $region32
        $region31: #{tpu_custom_call.1} parent=11 // pred_region
          %403 = vsyncadd [#allocation9], 0
          %s404 = sshll.u32 %s5, 4
          %s405 = int_to_ptr.hbm [resolvable:$true] %s404
          %s406 = sshll.u32 [#allocation10], 4
          %s407 = int_to_ptr.vmem [resolvable:$true] %s406
          %412 = dma.hbm_to_vmem [thread:$0]  %s405, 3072, %s407, [#allocation9], 192, 192, 12
        $region32: #{tpu_custom_call.1} parent=11 // pred_fallthru
          _
        // Predicated region
        $region33: #{tpu_custom_call.1} parent=11 // pred_check
          %p413 = pneg %p191
        $region34: #{tpu_custom_call.1} parent=11 // pred_check_branch
          %415 = sbr.rel (%p413) target = $region36
        $region35: #{tpu_custom_call.1} parent=11 // pred_region
          %417 = vsyncadd [#allocation12], 0
          %s418 = sshll.u32 %s6, 4
          %s419 = int_to_ptr.hbm [resolvable:$true] %s418
          %s420 = sshll.u32 [#allocation11], 4
          %s421 = int_to_ptr.vmem [resolvable:$true] %s420
          %426 = dma.hbm_to_vmem [thread:$0]  %s419, 1024, %s421, [#allocation12], 64, 64, 4
        $region36: #{tpu_custom_call.1} parent=11 // pred_fallthru
          _
        // Predicated region
        $region37: #{tpu_custom_call.1} parent=11 // pred_check
          %p427 = pneg %p212
        $region38: #{tpu_custom_call.1} parent=11 // pred_check_branch
          %429 = sbr.rel (%p427) target = $region40
        $region39: #{tpu_custom_call.1} parent=11 // pred_region
          %431 = vsyncadd [#allocation12], 0
          %s432 = sshll.u32 %s7, 4
          %s433 = int_to_ptr.hbm [resolvable:$true] %s432
          %s434 = sshll.u32 [#allocation13], 4
          %s435 = int_to_ptr.vmem [resolvable:$true] %s434
          %440 = dma.hbm_to_vmem [thread:$0]  %s433, 1024, %s435, [#allocation12], 64, 64, 4
        $region40: #{tpu_custom_call.1} parent=11 // pred_fallthru
          _
        // Predicated region
        $region41: #{tpu_custom_call.1} parent=11 // pred_check
          %p441 = pneg %p233
        $region42: #{tpu_custom_call.1} parent=11 // pred_check_branch
          %443 = sbr.rel (%p441) target = $region44
        $region43: #{tpu_custom_call.1} parent=11 // pred_region
          %445 = vsyncadd [#allocation15], 0
          %s446 = sshll.u32 %s8, 4
          %s447 = int_to_ptr.hbm [resolvable:$true] %s446
          %s448 = sshll.u32 [#allocation14], 4
          %s449 = int_to_ptr.vmem [resolvable:$true] %s448
          %454 = dma.hbm_to_vmem [thread:$0]  %s447, 1024, %s449, [#allocation15], 64, 64, 4
        $region44: #{tpu_custom_call.1} parent=11 // pred_fallthru
          _
        // Predicated region
        $region45: #{tpu_custom_call.1} parent=11 // pred_check
          %p455 = pneg %p254
        $region46: #{tpu_custom_call.1} parent=11 // pred_check_branch
          %457 = sbr.rel (%p455) target = $region48
        $region47: #{tpu_custom_call.1} parent=11 // pred_region
          %459 = vsyncadd [#allocation15], 0
          %s460 = sshll.u32 %s9, 4
          %s461 = int_to_ptr.hbm [resolvable:$true] %s460
          %s462 = sshll.u32 [#allocation16], 4
          %s463 = int_to_ptr.vmem [resolvable:$true] %s462
          %468 = dma.hbm_to_vmem [thread:$0]  %s461, 1024, %s463, [#allocation15], 64, 64, 4
        $region48: #{tpu_custom_call.1} parent=11 // pred_fallthru
          _
      $region12: #{tpu_custom_call.1} parent=5 // pred_fallthru
        _
      %p469 = scmp.lt.s32.totalorder %s33, 3
      // Predicated region
      $region49: #{tpu_custom_call.1} parent=5 // pred_check
        %p470 = pneg %p469
      $region50: #{tpu_custom_call.1} parent=5 // pred_check_branch
        %472 = sbr.rel (%p470) target = $region52
      $region51: #{tpu_custom_call.1} parent=5 // pred_region
        _
      $region52: #{tpu_custom_call.1} parent=5 // pred_fallthru
        _
      %p473 = scmp.le.s32.totalorder 1, %s33
      %p474 = scmp.lt.s32.totalorder %s33, 4
      %p475 = pnand %p473, %p474
      %p476 = pneg %p475
      // Predicated region
      $region53: #{tpu_custom_call.1} parent=5 // pred_check
        _
      $region54: #{tpu_custom_call.1} parent=5 // pred_check_branch
        %478 = sbr.rel (%p475) target = $region56
      $region55: #{tpu_custom_call.1} parent=5 // pred_region
        %s479 = ssub.s32 %s33, 1
        // Predicated region
        $region57: #{tpu_custom_call.1} parent=55 // pred_check
          %p480 = pneg %p97
        $region58: #{tpu_custom_call.1} parent=55 // pred_check_branch
          %482 = sbr.rel (%p480) target = $region60
        $region59: #{tpu_custom_call.1} parent=55 // pred_region
          %484 = dma.done [#allocation6], 256
        $region60: #{tpu_custom_call.1} parent=55 // pred_fallthru
          _
        // Predicated region
        $region61: #{tpu_custom_call.1} parent=55 // pred_check
          %p485 = pneg %p123
        $region62: #{tpu_custom_call.1} parent=55 // pred_check_branch
          %487 = sbr.rel (%p485) target = $region64
        $region63: #{tpu_custom_call.1} parent=55 // pred_region
          %489 = dma.done [#allocation9], 256
        $region64: #{tpu_custom_call.1} parent=55 // pred_fallthru
          _
        // Predicated region
        $region65: #{tpu_custom_call.1} parent=55 // pred_check
          %p490 = pneg %p170
        $region66: #{tpu_custom_call.1} parent=55 // pred_check_branch
          %492 = sbr.rel (%p490) target = $region68
        $region67: #{tpu_custom_call.1} parent=55 // pred_region
          %494 = dma.done [#allocation9], 3072
        $region68: #{tpu_custom_call.1} parent=55 // pred_fallthru
          _
        // Predicated region
        $region69: #{tpu_custom_call.1} parent=55 // pred_check
          %p495 = pneg %p191
        $region70: #{tpu_custom_call.1} parent=55 // pred_check_branch
          %497 = sbr.rel (%p495) target = $region72
        $region71: #{tpu_custom_call.1} parent=55 // pred_region
          %499 = dma.done [#allocation12], 1024
        $region72: #{tpu_custom_call.1} parent=55 // pred_fallthru
          _
        // Predicated region
        $region73: #{tpu_custom_call.1} parent=55 // pred_check
          %p500 = pneg %p212
        $region74: #{tpu_custom_call.1} parent=55 // pred_check_branch
          %502 = sbr.rel (%p500) target = $region76
        $region75: #{tpu_custom_call.1} parent=55 // pred_region
          %504 = dma.done [#allocation12], 1024
        $region76: #{tpu_custom_call.1} parent=55 // pred_fallthru
          _
        // Predicated region
        $region77: #{tpu_custom_call.1} parent=55 // pred_check
          %p505 = pneg %p233
        $region78: #{tpu_custom_call.1} parent=55 // pred_check_branch
          %507 = sbr.rel (%p505) target = $region80
        $region79: #{tpu_custom_call.1} parent=55 // pred_region
          %509 = dma.done [#allocation15], 1024
        $region80: #{tpu_custom_call.1} parent=55 // pred_fallthru
          _
        // Predicated region
        $region81: #{tpu_custom_call.1} parent=55 // pred_check
          %p510 = pneg %p254
        $region82: #{tpu_custom_call.1} parent=55 // pred_check_branch
          %512 = sbr.rel (%p510) target = $region84
        $region83: #{tpu_custom_call.1} parent=55 // pred_region
          %514 = dma.done [#allocation15], 1024
        $region84: #{tpu_custom_call.1} parent=55 // pred_fallthru
          _
        %s515 = smul.u32 2, %s42
        %p516 = scmp.lt.s32.totalorder %s515, 1
        %s517 = scalar_select %p516, %s515, 1
        %s518 = smul.addr %s517, 8
        %s519 = scalar_lea.vmem %s1, %s518
        %p520 = pneg %p71
        %p521 = pneg %p68
        %p522 = pneg %p97
        %p523 = pneg %p94
        %p524 = pneg %p123
        %p525 = pneg %p120
        %s526 = smul.u32 2, %s42
        %p527 = scmp.lt.s32.totalorder %s526, 1
        %s528 = scalar_select %p527, %s526, 1
        %s529 = smul.addr %s528, 8
        %s530 = scalar_lea.vmem %s4, %s529
        %p531 = pneg %p149
        %p532 = pneg %p146
        %p533 = pneg %p170
        %p534 = pneg %p167
        %p535 = pneg %p191
        %p536 = pneg %p188
        %p537 = pneg %p212
        %p538 = pneg %p209
        %p539 = pneg %p233
        %p540 = pneg %p230
        %p541 = pneg %p254
        %p542 = pneg %p251
        %p543 = pneg %p280
        %p544 = pneg %p277
        %p545 = pneg %p306
        %p546 = pneg %p303
        %p547 = pneg %p332
        %p548 = pneg %p329
        %s549 = smul.u32 2, %s42
        %p550 = scmp.lt.s32.totalorder %s549, 1
        %s551 = scalar_select %p550, %s549, 1
        %s552 = smul.addr %s551, 8
        %s553 = scalar_lea.vmem %s1, %s552
        %s554 = smul.u32 2, %s42
        %s555 = smul.u32 2, %s42
        %s556 = smul.u32 2, %s42
        %s557 = smul.u32 2, %s42
        %p558 = scmp.lt.s32.totalorder %s557, 1
        %s559 = scalar_select %p558, %s557, 1
        %s560 = smul.addr %s559, 8
        %s561 = scalar_lea.vmem %s4, %s560
        %s562 = smul.u32 2, %s42
        %s563 = smul.u32 2, %s42
        %s564 = smul.u32 2, %s42
        %p566 = scmp.eq.s32.totalorder %s43, 0
        // Predicated region
        $region85: #{tpu_custom_call.1} parent=55 // pred_check
          %p567 = pneg %p566
        $region86: #{tpu_custom_call.1} parent=55 // pred_check_branch
          %569 = sbr.rel (%p567) target = $region88
        $region87: #{tpu_custom_call.1} parent=55 // pred_region
          %v570 = vld [vmem:[%s553] sm:$0xff]
          %v571 = vld [vmem:[%s553 + $0x8] sm:$0xff]
          %572 = vst [vmem:[#allocation17] sm:$0xff] %v570
          %573 = vst [vmem:[#allocation17 + $0x8] sm:$0xff] %v571
        $region88: #{tpu_custom_call.1} parent=55 // pred_fallthru
          _
        %v574 = vld [vmem:[#allocation17] sm:$0xff]
        %v575 = vld [vmem:[#allocation17 + $0x8] sm:$0xff]
        %v576 = vld [vmem:[#allocation5] sm:$0xff]
        %v577 = vld [vmem:[#allocation5 + $0x8] sm:$0xff]
        %v578 = vadd.f32 %v574, %v576
        %v579 = vadd.f32 %v575, %v577
        %v580 = vpack.c.bf16 %v579, %v578
        %v581 = vld [vmem:[#allocation10] sm:$0xff]
        %v582 = vld [vmem:[#allocation10 + $0x8] sm:$0xf]
        %v583 = vld [vmem:[#allocation10 + $0xc] sm:$0xff]
        %v584 = vld [vmem:[#allocation10 + $0x14] sm:$0xf]
        %v585 = vld [vmem:[#allocation10 + $0x18] sm:$0xff]
        %v586 = vld [vmem:[#allocation10 + $0x20] sm:$0xf]
        %v587 = vld [vmem:[#allocation10 + $0x24] sm:$0xff]
        %v588 = vld [vmem:[#allocation10 + $0x2c] sm:$0xf]
        %v589 = vld [vmem:[#allocation10 + $0x30] sm:$0xff]
        %v590 = vld [vmem:[#allocation10 + $0x38] sm:$0xf]
        %v591 = vld [vmem:[#allocation10 + $0x3c] sm:$0xff]
        %v592 = vld [vmem:[#allocation10 + $0x44] sm:$0xf]
        %v593 = vld [vmem:[#allocation10 + $0x48] sm:$0xff]
        %v594 = vld [vmem:[#allocation10 + $0x50] sm:$0xf]
        %v595 = vld [vmem:[#allocation10 + $0x54] sm:$0xff]
        %v596 = vld [vmem:[#allocation10 + $0x5c] sm:$0xf]
        %v597 = vld [vmem:[#allocation10 + $0x60] sm:$0xff]
        %v598 = vld [vmem:[#allocation10 + $0x68] sm:$0xf]
        %v599 = vld [vmem:[#allocation10 + $0x6c] sm:$0xff]
        %v600 = vld [vmem:[#allocation10 + $0x74] sm:$0xf]
        %v601 = vld [vmem:[#allocation10 + $0x78] sm:$0xff]
        %v602 = vld [vmem:[#allocation10 + $0x80] sm:$0xf]
        %v603 = vld [vmem:[#allocation10 + $0x84] sm:$0xff]
        %v604 = vld [vmem:[#allocation10 + $0x8c] sm:$0xf]
        %v605 = vld [vmem:[#allocation10 + $0x90] sm:$0xff]
        %v606 = vld [vmem:[#allocation10 + $0x98] sm:$0xf]
        %v607 = vld [vmem:[#allocation10 + $0x9c] sm:$0xff]
        %v608 = vld [vmem:[#allocation10 + $0xa4] sm:$0xf]
        %v609 = vld [vmem:[#allocation10 + $0xa8] sm:$0xff]
        %v610 = vld [vmem:[#allocation10 + $0xb0] sm:$0xf]
        %v611 = vld [vmem:[#allocation10 + $0xb4] sm:$0xff]
        %v612 = vld [vmem:[#allocation10 + $0xbc] sm:$0xf]
        %v645 = vunpack.c.l.b16 %v581
        %v646 = vunpack.c.h.b16 %v581
        %v647 = vunpack.c.l.b16 %v582
        %v648 = vunpack.c.l.b16 %v583
        %v649 = vunpack.c.h.b16 %v583
        %v650 = vunpack.c.l.b16 %v584
        %v651 = vunpack.c.l.b16 %v585
        %v652 = vunpack.c.h.b16 %v585
        %v653 = vunpack.c.l.b16 %v586
        %v654 = vunpack.c.l.b16 %v587
        %v655 = vunpack.c.h.b16 %v587
        %v656 = vunpack.c.l.b16 %v588
        %v657 = vunpack.c.l.b16 %v589
        %v658 = vunpack.c.h.b16 %v589
        %v659 = vunpack.c.l.b16 %v590
        %v660 = vunpack.c.l.b16 %v591
        %v661 = vunpack.c.h.b16 %v591
        %v662 = vunpack.c.l.b16 %v592
        %v663 = vunpack.c.l.b16 %v593
        %v664 = vunpack.c.h.b16 %v593
        %v665 = vunpack.c.l.b16 %v594
        %v666 = vunpack.c.l.b16 %v595
        %v667 = vunpack.c.h.b16 %v595
        %v668 = vunpack.c.l.b16 %v596
        %v669 = vunpack.c.l.b16 %v597
        %v670 = vunpack.c.h.b16 %v597
        %v671 = vunpack.c.l.b16 %v598
        %v672 = vunpack.c.l.b16 %v599
        %v673 = vunpack.c.h.b16 %v599
        %v674 = vunpack.c.l.b16 %v600
        %v675 = vunpack.c.l.b16 %v601
        %v676 = vunpack.c.h.b16 %v601
        %v677 = vunpack.c.l.b16 %v602
        %v678 = vunpack.c.l.b16 %v603
        %v679 = vunpack.c.h.b16 %v603
        %v680 = vunpack.c.l.b16 %v604
        %v681 = vunpack.c.l.b16 %v605
        %v682 = vunpack.c.h.b16 %v605
        %v683 = vunpack.c.l.b16 %v606
        %v684 = vunpack.c.l.b16 %v607
        %v685 = vunpack.c.h.b16 %v607
        %v686 = vunpack.c.l.b16 %v608
        %v687 = vunpack.c.l.b16 %v609
        %v688 = vunpack.c.h.b16 %v609
        %v689 = vunpack.c.l.b16 %v610
        %v690 = vunpack.c.l.b16 %v611
        %v691 = vunpack.c.h.b16 %v611
        %v692 = vunpack.c.l.b16 %v612
        %v693 = vpack.c.b16 %v648, %v645
        %v694 = vpack.c.b16 %v649, %v646
        %v695 = vpack.c.b16 %v650, %v647
        %v696 = vpack.c.b16 %v654, %v651
        %v697 = vpack.c.b16 %v655, %v652
        %v698 = vpack.c.b16 %v656, %v653
        %v699 = vpack.c.b16 %v660, %v657
        %v700 = vpack.c.b16 %v661, %v658
        %v701 = vpack.c.b16 %v662, %v659
        %v702 = vpack.c.b16 %v666, %v663
        %v703 = vpack.c.b16 %v667, %v664
        %v704 = vpack.c.b16 %v668, %v665
        %v705 = vpack.c.b16 %v672, %v669
        %v706 = vpack.c.b16 %v673, %v670
        %v707 = vpack.c.b16 %v674, %v671
        %v708 = vpack.c.b16 %v678, %v675
        %v709 = vpack.c.b16 %v679, %v676
        %v710 = vpack.c.b16 %v680, %v677
        %v711 = vpack.c.b16 %v684, %v681
        %v712 = vpack.c.b16 %v685, %v682
        %v713 = vpack.c.b16 %v686, %v683
        %v714 = vpack.c.b16 %v690, %v687
        %v715 = vpack.c.b16 %v691, %v688
        %v716 = vpack.c.b16 %v692, %v689
        %741 = vmatpush.bf16.msra.mxu0 %v714
        %742 = vmatpush.bf16.msra.mxu0 %v711
        %743 = vmatpush.bf16.msra.mxu0 %v708
        %744 = vmatpush.bf16.msra.mxu0 %v705
        %745 = vmatpush.bf16.msra.mxu0 %v702
        %746 = vmatpush.bf16.msra.mxu0 %v699
        %747 = vmatpush.bf16.msra.mxu0 %v696
        %748 = vmatpush.bf16.msra.mxu0 %v693
        %749 = vmatmul.bf16.gmra.mxu0 %v580
        %v750 = vpop.f32.mrf.mxu0
        %v751 = vadd.f32 0.0, %v750
        %v752 = vpop.f32.mrf.mxu0
        %v753 = vadd.f32 0.0, %v752
        %754 = vdwg.mxu0
        %755 = vmatpush.bf16.msra.mxu0 %v715
        %756 = vmatpush.bf16.msra.mxu0 %v712
        %757 = vmatpush.bf16.msra.mxu0 %v709
        %758 = vmatpush.bf16.msra.mxu0 %v706
        %759 = vmatpush.bf16.msra.mxu0 %v703
        %760 = vmatpush.bf16.msra.mxu0 %v700
        %761 = vmatpush.bf16.msra.mxu0 %v697
        %762 = vmatpush.bf16.msra.mxu0 %v694
        %763 = vmatmul.bf16.gmra.mxu0 %v580
        %v764 = vpop.f32.mrf.mxu0
        %v765 = vadd.f32 0.0, %v764
        %v766 = vpop.f32.mrf.mxu0
        %v767 = vadd.f32 0.0, %v766
        %768 = vdwg.mxu0
        %769 = vmatpush.bf16.msra.mxu0 %v716
        %770 = vmatpush.bf16.msra.mxu0 %v713
        %771 = vmatpush.bf16.msra.mxu0 %v710
        %772 = vmatpush.bf16.msra.mxu0 %v707
        %773 = vmatpush.bf16.msra.mxu0 %v704
        %774 = vmatpush.bf16.msra.mxu0 %v701
        %775 = vmatpush.bf16.msra.mxu0 %v698
        %776 = vmatpush.bf16.msra.mxu0 %v695
        %777 = vmatmul.bf16.gmra.mxu0 %v580
        %v778 = vpop.f32.mrf.mxu0
        %v779 = vadd.f32 0.0, %v778
        %v780 = vpop.f32.mrf.mxu0
        %v781 = vadd.f32 0.0, %v780
        %782 = vdwg.mxu0
        %v783 = vpack.c.bf16 %v751, %v751
        %v784 = vpack.c.bf16 %v753, %v753
        %v785 = vpack.c.bf16 %v765, %v765
        %v786 = vpack.c.bf16 %v767, %v767
        %v787 = vpack.c.bf16 %v779, %v779
        %v788 = vpack.c.bf16 %v781, %v781
        %v789 = vld [vmem:[#allocation8] sm:$0xff]
        %v790 = vld [vmem:[#allocation8 + $0x8] sm:$0xff]
        %791 = vmatpush.bf16.xpose.msra.mxu0 0
        %792 = vmatpush.bf16.xpose.msra.mxu0 0
        %793 = vmatpush.bf16.xpose.msra.mxu0 0
        %794 = vmatpush.bf16.xpose.msra.mxu0 0
        %795 = vmatpush.bf16.xpose.msra.mxu0 0
        %796 = vmatpush.bf16.xpose.msra.mxu0 0
        %797 = vmatpush.bf16.xpose.msra.mxu0 0
        %798 = vmatpush.bf16.xpose.msra.mxu0 %v785
        %799 = vmatmul.bf16.gmra.mxu0 %v783
        %v800 = vpop.f32.mrf.mxu0
        %v801 = vadd.f32 %v789, %v800
        %v802 = vpop.f32.mrf.mxu0
        %803 = vdwg.mxu0
        %804 = vmatpush.bf16.xpose.msra.mxu0 0
        %805 = vmatpush.bf16.xpose.msra.mxu0 0
        %806 = vmatpush.bf16.xpose.msra.mxu0 0
        %807 = vmatpush.bf16.xpose.msra.mxu0 0
        %808 = vmatpush.bf16.xpose.msra.mxu0 0
        %809 = vmatpush.bf16.xpose.msra.mxu0 0
        %810 = vmatpush.bf16.xpose.msra.mxu0 0
        %811 = vmatpush.bf16.xpose.msra.mxu0 %v786
        %812 = vmatmul.bf16.gmra.mxu0 %v784
        %v813 = vpop.f32.mrf.mxu0
        %v814 = vadd.f32 %v790, %v813
        %v815 = vpop.f32.mrf.mxu0
        %816 = vdwg.mxu0
        %vm817 = vcmask 64512
        %v818 = vsel %vm817, %v801, -inf
        %819 = vmax.xlane.f32.xlu0 %v818
        %v820 = vpop.xlane.xlu0 %819
        %v821 = vsel %vm817, %v814, -inf
        %822 = vmax.xlane.f32.xlu0 %v821
        %v823 = vpop.xlane.xlu0 %822
        %v824 = vsub.f32 %v801, %v820
        %v825 = vsub.f32 %v814, %v823
        %v826 = vmul.f32 %v824, 1.442695
        %v827 = vpow.pop %v826
        %v828 = vmul.f32 %v825, 1.442695
        %v829 = vpow.pop %v828
        %v830 = vsel %vm817, %v827, 0.0
        %831 = vadd.xlane.f32.xlu0 %v830
        %v832 = vpop.xlane.xlu0 %831
        %v833 = vsel %vm817, %v829, 0.0
        %834 = vadd.xlane.f32.xlu0 %v833
        %v835 = vpop.xlane.xlu0 %834
        %v836 = vrcp.pop %v832
        %v837 = vrcp.pop %v835
        %v838 = vmul.f32 %v827, %v836
        %v839 = vmul.f32 %v829, %v837
        %v840 = vpack.c.bf16 %v838, %v838
        %v841 = vpack.c.bf16 %v839, %v839
        %v843 = vsel %vm817, %v840, 0
        %vm845 = vcmask 1043456
        %v847 = vsel %vm845, %v787, 0
        %849 = vmatpush.bf16.msra.mxu0 0
        %850 = vmatpush.bf16.msra.mxu0 0
        %851 = vmatpush.bf16.msra.mxu0 0
        %852 = vmatpush.bf16.msra.mxu0 0
        %853 = vmatpush.bf16.msra.mxu0 0
        %854 = vmatpush.bf16.msra.mxu0 0
        %855 = vmatpush.bf16.msra.mxu0 0
        %856 = vmatpush.bf16.msra.mxu0 %v847
        %857 = vmatmul.bf16.gmra.mxu0 %v843
        %v858 = vpop.f32.mrf.mxu0
        %v859 = vadd.f32 0.0, %v858
        %v860 = vpop.f32.mrf.mxu0
        %861 = vdwg.mxu0
        %v863 = vsel %vm817, %v841, 0
        %v866 = vsel %vm845, %v788, 0
        %868 = vmatpush.bf16.msra.mxu0 0
        %869 = vmatpush.bf16.msra.mxu0 0
        %870 = vmatpush.bf16.msra.mxu0 0
        %871 = vmatpush.bf16.msra.mxu0 0
        %872 = vmatpush.bf16.msra.mxu0 0
        %873 = vmatpush.bf16.msra.mxu0 0
        %874 = vmatpush.bf16.msra.mxu0 0
        %875 = vmatpush.bf16.msra.mxu0 %v866
        %876 = vmatmul.bf16.gmra.mxu0 %v863
        %v877 = vpop.f32.mrf.mxu0
        %v878 = vadd.f32 0.0, %v877
        %v879 = vpop.f32.mrf.mxu0
        %880 = vdwg.mxu0
        %v881 = vpack.c.bf16 %v878, %v859
        %v882 = vld [vmem:[#allocation11] sm:$0xf]
        %v883 = vld [vmem:[#allocation11 + $0x4] sm:$0xf]
        %v884 = vld [vmem:[#allocation11 + $0x8] sm:$0xf]
        %v885 = vld [vmem:[#allocation11 + $0xc] sm:$0xf]
        %v886 = vld [vmem:[#allocation11 + $0x10] sm:$0xf]
        %v887 = vld [vmem:[#allocation11 + $0x14] sm:$0xf]
        %v888 = vld [vmem:[#allocation11 + $0x18] sm:$0xf]
        %v889 = vld [vmem:[#allocation11 + $0x1c] sm:$0xf]
        %v890 = vld [vmem:[#allocation11 + $0x20] sm:$0xf]
        %v891 = vld [vmem:[#allocation11 + $0x24] sm:$0xf]
        %v892 = vld [vmem:[#allocation11 + $0x28] sm:$0xf]
        %v893 = vld [vmem:[#allocation11 + $0x2c] sm:$0xf]
        %v894 = vld [vmem:[#allocation11 + $0x30] sm:$0xf]
        %v895 = vld [vmem:[#allocation11 + $0x34] sm:$0xf]
        %v896 = vld [vmem:[#allocation11 + $0x38] sm:$0xf]
        %v897 = vld [vmem:[#allocation11 + $0x3c] sm:$0xf]
        %v914 = vunpack.c.l.b16 %v882
        %v915 = vunpack.c.l.b16 %v883
        %v916 = vunpack.c.l.b16 %v884
        %v917 = vunpack.c.l.b16 %v885
        %v918 = vunpack.c.l.b16 %v886
        %v919 = vunpack.c.l.b16 %v887
        %v920 = vunpack.c.l.b16 %v888
        %v921 = vunpack.c.l.b16 %v889
        %v922 = vunpack.c.l.b16 %v890
        %v923 = vunpack.c.l.b16 %v891
        %v924 = vunpack.c.l.b16 %v892
        %v925 = vunpack.c.l.b16 %v893
        %v926 = vunpack.c.l.b16 %v894
        %v927 = vunpack.c.l.b16 %v895
        %v928 = vunpack.c.l.b16 %v896
        %v929 = vunpack.c.l.b16 %v897
        %v930 = vpack.c.b16 %v915, %v914
        %v931 = vpack.c.b16 %v917, %v916
        %v932 = vpack.c.b16 %v919, %v918
        %v933 = vpack.c.b16 %v921, %v920
        %v934 = vpack.c.b16 %v923, %v922
        %v935 = vpack.c.b16 %v925, %v924
        %v936 = vpack.c.b16 %v927, %v926
        %v937 = vpack.c.b16 %v929, %v928
        %946 = vmatpush.bf16.msra.mxu0 %v937
        %947 = vmatpush.bf16.msra.mxu0 %v936
        %948 = vmatpush.bf16.msra.mxu0 %v935
        %949 = vmatpush.bf16.msra.mxu0 %v934
        %950 = vmatpush.bf16.msra.mxu0 %v933
        %951 = vmatpush.bf16.msra.mxu0 %v932
        %952 = vmatpush.bf16.msra.mxu0 %v931
        %953 = vmatpush.bf16.msra.mxu0 %v930
        %954 = vmatmul.bf16.gmra.mxu0 %v881
        %v955 = vpop.f32.mrf.mxu0
        %v956 = vadd.f32 0.0, %v955
        %v957 = vpop.f32.mrf.mxu0
        %v958 = vadd.f32 0.0, %v957
        %959 = vdwg.mxu0
        %v960 = vadd.f32 %v578, %v956
        %v961 = vadd.f32 %v579, %v958
        %v962 = vpack.c.bf16 %v961, %v960
        %v963 = vld [vmem:[#allocation13] sm:$0xf]
        %v964 = vld [vmem:[#allocation13 + $0x4] sm:$0xf]
        %v965 = vld [vmem:[#allocation13 + $0x8] sm:$0xf]
        %v966 = vld [vmem:[#allocation13 + $0xc] sm:$0xf]
        %v967 = vld [vmem:[#allocation13 + $0x10] sm:$0xf]
        %v968 = vld [vmem:[#allocation13 + $0x14] sm:$0xf]
        %v969 = vld [vmem:[#allocation13 + $0x18] sm:$0xf]
        %v970 = vld [vmem:[#allocation13 + $0x1c] sm:$0xf]
        %v971 = vld [vmem:[#allocation13 + $0x20] sm:$0xf]
        %v972 = vld [vmem:[#allocation13 + $0x24] sm:$0xf]
        %v973 = vld [vmem:[#allocation13 + $0x28] sm:$0xf]
        %v974 = vld [vmem:[#allocation13 + $0x2c] sm:$0xf]
        %v975 = vld [vmem:[#allocation13 + $0x30] sm:$0xf]
        %v976 = vld [vmem:[#allocation13 + $0x34] sm:$0xf]
        %v977 = vld [vmem:[#allocation13 + $0x38] sm:$0xf]
        %v978 = vld [vmem:[#allocation13 + $0x3c] sm:$0xf]
        %v995 = vunpack.c.l.b16 %v963
        %v996 = vunpack.c.l.b16 %v964
        %v997 = vunpack.c.l.b16 %v965
        %v998 = vunpack.c.l.b16 %v966
        %v999 = vunpack.c.l.b16 %v967
        %v1000 = vunpack.c.l.b16 %v968
        %v1001 = vunpack.c.l.b16 %v969
        %v1002 = vunpack.c.l.b16 %v970
        %v1003 = vunpack.c.l.b16 %v971
        %v1004 = vunpack.c.l.b16 %v972
        %v1005 = vunpack.c.l.b16 %v973
        %v1006 = vunpack.c.l.b16 %v974
        %v1007 = vunpack.c.l.b16 %v975
        %v1008 = vunpack.c.l.b16 %v976
        %v1009 = vunpack.c.l.b16 %v977
        %v1010 = vunpack.c.l.b16 %v978
        %v1011 = vpack.c.b16 %v996, %v995
        %v1012 = vpack.c.b16 %v998, %v997
        %v1013 = vpack.c.b16 %v1000, %v999
        %v1014 = vpack.c.b16 %v1002, %v1001
        %v1015 = vpack.c.b16 %v1004, %v1003
        %v1016 = vpack.c.b16 %v1006, %v1005
        %v1017 = vpack.c.b16 %v1008, %v1007
        %v1018 = vpack.c.b16 %v1010, %v1009
        %1027 = vmatpush.bf16.msra.mxu0 %v1018
        %1028 = vmatpush.bf16.msra.mxu0 %v1017
        %1029 = vmatpush.bf16.msra.mxu0 %v1016
        %1030 = vmatpush.bf16.msra.mxu0 %v1015
        %1031 = vmatpush.bf16.msra.mxu0 %v1014
        %1032 = vmatpush.bf16.msra.mxu0 %v1013
        %1033 = vmatpush.bf16.msra.mxu0 %v1012
        %1034 = vmatpush.bf16.msra.mxu0 %v1011
        %1035 = vmatmul.bf16.gmra.mxu0 %v962
        %v1036 = vpop.f32.mrf.mxu0
        %v1037 = vadd.f32 0.0, %v1036
        %v1038 = vpop.f32.mrf.mxu0
        %v1039 = vadd.f32 0.0, %v1038
        %1040 = vdwg.mxu0
        %v1041 = vmax.f32 %v1037, 0.0
        %v1042 = vmax.f32 %v1039, 0.0
        %v1043 = vpack.c.bf16 %v1042, %v1041
        %v1044 = vld [vmem:[#allocation14] sm:$0xf]
        %v1045 = vld [vmem:[#allocation14 + $0x4] sm:$0xf]
        %v1046 = vld [vmem:[#allocation14 + $0x8] sm:$0xf]
        %v1047 = vld [vmem:[#allocation14 + $0xc] sm:$0xf]
        %v1048 = vld [vmem:[#allocation14 + $0x10] sm:$0xf]
        %v1049 = vld [vmem:[#allocation14 + $0x14] sm:$0xf]
        %v1050 = vld [vmem:[#allocation14 + $0x18] sm:$0xf]
        %v1051 = vld [vmem:[#allocation14 + $0x1c] sm:$0xf]
        %v1052 = vld [vmem:[#allocation14 + $0x20] sm:$0xf]
        %v1053 = vld [vmem:[#allocation14 + $0x24] sm:$0xf]
        %v1054 = vld [vmem:[#allocation14 + $0x28] sm:$0xf]
        %v1055 = vld [vmem:[#allocation14 + $0x2c] sm:$0xf]
        %v1056 = vld [vmem:[#allocation14 + $0x30] sm:$0xf]
        %v1057 = vld [vmem:[#allocation14 + $0x34] sm:$0xf]
        %v1058 = vld [vmem:[#allocation14 + $0x38] sm:$0xf]
        %v1059 = vld [vmem:[#allocation14 + $0x3c] sm:$0xf]
        %v1076 = vunpack.c.l.b16 %v1044
        %v1077 = vunpack.c.l.b16 %v1045
        %v1078 = vunpack.c.l.b16 %v1046
        %v1079 = vunpack.c.l.b16 %v1047
        %v1080 = vunpack.c.l.b16 %v1048
        %v1081 = vunpack.c.l.b16 %v1049
        %v1082 = vunpack.c.l.b16 %v1050
        %v1083 = vunpack.c.l.b16 %v1051
        %v1084 = vunpack.c.l.b16 %v1052
        %v1085 = vunpack.c.l.b16 %v1053
        %v1086 = vunpack.c.l.b16 %v1054
        %v1087 = vunpack.c.l.b16 %v1055
        %v1088 = vunpack.c.l.b16 %v1056
        %v1089 = vunpack.c.l.b16 %v1057
        %v1090 = vunpack.c.l.b16 %v1058
        %v1091 = vunpack.c.l.b16 %v1059
        %v1092 = vpack.c.b16 %v1077, %v1076
        %v1093 = vpack.c.b16 %v1079, %v1078
        %v1094 = vpack.c.b16 %v1081, %v1080
        %v1095 = vpack.c.b16 %v1083, %v1082
        %v1096 = vpack.c.b16 %v1085, %v1084
        %v1097 = vpack.c.b16 %v1087, %v1086
        %v1098 = vpack.c.b16 %v1089, %v1088
        %v1099 = vpack.c.b16 %v1091, %v1090
        %1108 = vmatpush.bf16.msra.mxu0 %v1099
        %1109 = vmatpush.bf16.msra.mxu0 %v1098
        %1110 = vmatpush.bf16.msra.mxu0 %v1097
        %1111 = vmatpush.bf16.msra.mxu0 %v1096
        %1112 = vmatpush.bf16.msra.mxu0 %v1095
        %1113 = vmatpush.bf16.msra.mxu0 %v1094
        %1114 = vmatpush.bf16.msra.mxu0 %v1093
        %1115 = vmatpush.bf16.msra.mxu0 %v1092
        %1116 = vmatmul.bf16.gmra.mxu0 %v1043
        %v1117 = vpop.f32.mrf.mxu0
        %v1118 = vadd.f32 0.0, %v1117
        %v1119 = vpop.f32.mrf.mxu0
        %v1120 = vadd.f32 0.0, %v1119
        %1121 = vdwg.mxu0
        %v1122 = vadd.f32 %v960, %v1118
        %v1123 = vadd.f32 %v961, %v1120
        %p1124 = scmp.lt.s32.totalorder %s43, 2
        // Predicated region
        $region89: #{tpu_custom_call.1} parent=55 // pred_check
          %p1125 = pneg %p1124
        $region90: #{tpu_custom_call.1} parent=55 // pred_check_branch
          %1127 = sbr.rel (%p1125) target = $region92
        $region91: #{tpu_custom_call.1} parent=55 // pred_region
          %1128 = vst [vmem:[#allocation2] sm:$0xff] %v1122
          %1129 = vst [vmem:[#allocation2 + $0x8] sm:$0xff] %v1123
          %s1130 = smul.u32 %s43, 2
          %s1131 = smul.u32 %s42, 2
          %s1132 = sadd.s32 %s1130, %s1131
          %s1133 = sld [smem:[#allocation4 + %s1132]]
          %p1134 = scmp.gt.s32.totalorder %s1133, 0
          // Predicated region
          $region93: #{tpu_custom_call.1} parent=91 // pred_check
            %p1135 = pneg %p1134
          $region94: #{tpu_custom_call.1} parent=91 // pred_check_branch
            %1137 = sbr.rel (%p1135) target = $region96
          $region95: #{tpu_custom_call.1} parent=91 // pred_region
            %s1138 = ssub.s32 %s1133, 1
            %s1139 = scalar_lea.vmem [#allocation2], %s1138
            %v1140 = vld [vmem:[%s1139] sm:$0x1]
            %s1141 = scalar_lea.vmem [#allocation17], %s1133
            %1142 = vst [vmem:[%s1141] sm:$0x1] %v1140
          $region96: #{tpu_custom_call.1} parent=91 // pred_fallthru
            _
          %s1143 = sadd.s32 %s1132, 1
          %s1144 = sld [smem:[#allocation4 + %s1143]]
          %p1145 = scmp.gt.s32.totalorder %s1144, 0
          // Predicated region
          $region97: #{tpu_custom_call.1} parent=91 // pred_check
            %p1146 = pneg %p1145
          $region98: #{tpu_custom_call.1} parent=91 // pred_check_branch
            %1148 = sbr.rel (%p1146) target = $region100
          $region99: #{tpu_custom_call.1} parent=91 // pred_region
            %s1149 = ssub.s32 %s1144, 1
            %s1150 = scalar_lea.vmem [#allocation2], 8
            %s1151 = scalar_lea.vmem %s1150, %s1149 [#allocation2]
            %v1152 = vld [vmem:[%s1151] sm:$0x1]
            %s1153 = scalar_lea.vmem [#allocation17], 8
            %s1154 = scalar_lea.vmem %s1153, %s1144 [#allocation17]
            %1155 = vst [vmem:[%s1154] sm:$0x1] %v1152
          $region100: #{tpu_custom_call.1} parent=91 // pred_fallthru
            _
        $region92: #{tpu_custom_call.1} parent=55 // pred_fallthru
          _
        %p1156 = scmp.eq.s32.totalorder %s43, 2
        // Predicated region
        $region101: #{tpu_custom_call.1} parent=55 // pred_check
          %p1157 = pneg %p1156
        $region102: #{tpu_custom_call.1} parent=55 // pred_check_branch
          %1159 = sbr.rel (%p1157) target = $region104
        $region103: #{tpu_custom_call.1} parent=55 // pred_region
          %v1160 = vpack.c.bf16 %v1123, %v1122
          %v1161 = vld [vmem:[#allocation16] sm:$0xf]
          %v1162 = vld [vmem:[#allocation16 + $0x4] sm:$0xf]
          %v1163 = vld [vmem:[#allocation16 + $0x8] sm:$0xf]
          %v1164 = vld [vmem:[#allocation16 + $0xc] sm:$0xf]
          %v1165 = vld [vmem:[#allocation16 + $0x10] sm:$0xf]
          %v1166 = vld [vmem:[#allocation16 + $0x14] sm:$0xf]
          %v1167 = vld [vmem:[#allocation16 + $0x18] sm:$0xf]
          %v1168 = vld [vmem:[#allocation16 + $0x1c] sm:$0xf]
          %v1169 = vld [vmem:[#allocation16 + $0x20] sm:$0xf]
          %v1170 = vld [vmem:[#allocation16 + $0x24] sm:$0xf]
          %v1171 = vld [vmem:[#allocation16 + $0x28] sm:$0xf]
          %v1172 = vld [vmem:[#allocation16 + $0x2c] sm:$0xf]
          %v1173 = vld [vmem:[#allocation16 + $0x30] sm:$0xf]
          %v1174 = vld [vmem:[#allocation16 + $0x34] sm:$0xf]
          %v1175 = vld [vmem:[#allocation16 + $0x38] sm:$0xf]
          %v1176 = vld [vmem:[#allocation16 + $0x3c] sm:$0xf]
          %v1193 = vunpack.c.l.b16 %v1161
          %v1194 = vunpack.c.l.b16 %v1162
          %v1195 = vunpack.c.l.b16 %v1163
          %v1196 = vunpack.c.l.b16 %v1164
          %v1197 = vunpack.c.l.b16 %v1165
          %v1198 = vunpack.c.l.b16 %v1166
          %v1199 = vunpack.c.l.b16 %v1167
          %v1200 = vunpack.c.l.b16 %v1168
          %v1201 = vunpack.c.l.b16 %v1169
          %v1202 = vunpack.c.l.b16 %v1170
          %v1203 = vunpack.c.l.b16 %v1171
          %v1204 = vunpack.c.l.b16 %v1172
          %v1205 = vunpack.c.l.b16 %v1173
          %v1206 = vunpack.c.l.b16 %v1174
          %v1207 = vunpack.c.l.b16 %v1175
          %v1208 = vunpack.c.l.b16 %v1176
          %v1209 = vpack.c.b16 %v1194, %v1193
          %v1210 = vpack.c.b16 %v1196, %v1195
          %v1211 = vpack.c.b16 %v1198, %v1197
          %v1212 = vpack.c.b16 %v1200, %v1199
          %v1213 = vpack.c.b16 %v1202, %v1201
          %v1214 = vpack.c.b16 %v1204, %v1203
          %v1215 = vpack.c.b16 %v1206, %v1205
          %v1216 = vpack.c.b16 %v1208, %v1207
          %1225 = vmatpush.bf16.msra.mxu0 %v1216
          %1226 = vmatpush.bf16.msra.mxu0 %v1215
          %1227 = vmatpush.bf16.msra.mxu0 %v1214
          %1228 = vmatpush.bf16.msra.mxu0 %v1213
          %1229 = vmatpush.bf16.msra.mxu0 %v1212
          %1230 = vmatpush.bf16.msra.mxu0 %v1211
          %1231 = vmatpush.bf16.msra.mxu0 %v1210
          %1232 = vmatpush.bf16.msra.mxu0 %v1209
          %1233 = vmatmul.bf16.gmra.mxu0 %v1160
          %v1234 = vpop.f32.mrf.mxu0
          %v1235 = vadd.f32 0.0, %v1234
          %v1236 = vpop.f32.mrf.mxu0
          %v1237 = vadd.f32 0.0, %v1236
          %1238 = vdwg.mxu0
          %1239 = vst [vmem:[#allocation18] sm:$0xff] %v1235
          %1240 = vst [vmem:[#allocation18 + $0x8] sm:$0xff] %v1237
          %v1241 = vld [vmem:[%s561] sm:$0xff]
          %v1242 = vld [vmem:[%s561 + $0x8] sm:$0xff]
          %v1243 = vlaneseq
          %v1244 = vand.u32 %v1243, 127
          %vm1245 = vcmp.lt.s32.totalorder %v1244, 64
          %v1246 = vsel %vm1245, %v1235, -1e+30
          %v1247 = vsel %vm1245, %v1237, -1e+30
          %1248 = vmax.xlane.f32.xlu0 %v1246
          %v1249 = vpop.xlane.xlu0 %1248
          %1250 = vmax.xlane.f32.xlu0 %v1247
          %v1251 = vpop.xlane.xlu0 %1250
          %v1252 = vsub.f32 %v1246, %v1249
          %v1253 = vsub.f32 %v1247, %v1251
          %v1254 = vmul.f32 %v1252, 1.442695
          %v1255 = vpow.pop %v1254
          %v1256 = vmul.f32 %v1253, 1.442695
          %v1257 = vpow.pop %v1256
          %1258 = vadd.xlane.f32.xlu0 %v1255
          %v1259 = vpop.xlane.xlu0 %1258
          %1260 = vadd.xlane.f32.xlu0 %v1257
          %v1261 = vpop.xlane.xlu0 %1260
          %v1262 = vlog2.pop %v1259
          %v1263 = vmul.f32 %v1262, 0.6931472
          %v1264 = vlog2.pop %v1261
          %v1265 = vmul.f32 %v1264, 0.6931472
          %v1266 = vadd.f32 %v1249, %v1263
          %v1267 = vadd.f32 %v1251, %v1265
          %1268 = vset.pattern.permute.xlu0 0
          %1269 = vperm.xlu0 %1268, %v1241
          %v1270 = vpop.permute.xlu0 %1269
          %1271 = vset.pattern.permute.xlu0 0
          %1272 = vperm.xlu0 %1271, %v1242
          %v1273 = vpop.permute.xlu0 %1272
          %vm1274 = vcmp.eq.s32.totalorder %v1244, %v1270
          %vm1275 = vcmp.eq.s32.totalorder %v1244, %v1273
          %v1276 = vsel %vm1274, %v1246, 0.0
          %v1277 = vsel %vm1275, %v1247, 0.0
          %1278 = vadd.xlane.f32.xlu0 %v1276
          %v1279 = vpop.xlane.xlu0 %1278
          %1280 = vadd.xlane.f32.xlu0 %v1277
          %v1281 = vpop.xlane.xlu0 %1280
          %vm1282 = vcmp.ne.s32.totalorder %v1241, 4294967196
          %vm1283 = vcmp.ne.s32.totalorder %v1242, 4294967196
          %v1284 = vsub.f32 %v1266, %v1279
          %v1285 = vsub.f32 %v1267, %v1281
          %v1286 = vsel %vm1282, %v1284, 0.0
          %v1287 = vsel %vm1283, %v1285, 0.0
          %vm1288 = vcmask 7168
          %v1289 = vsel %vm1288, %v1286, 0.0
          %v1290 = vsel %vm1288, %v1287, 0.0
          %v1291 = vadd.f32 %v1289, %v1290
          %v1292 = vrot.slane %v1291, 4
          %v1293 = vadd.f32 %v1291, %v1292
          %v1294 = vrot.slane %v1293, 2
          %v1295 = vadd.f32 %v1293, %v1294
          %v1296 = vrot.slane %v1295, 1
          %v1297 = vadd.f32 %v1295, %v1296
          %v1298 = vsel %vm1282, 1, 0
          %v1299 = vsel %vm1283, 1, 0
          %v1300 = vcvt.s32.f32 %v1298
          %v1301 = vcvt.s32.f32 %v1299
          %v1302 = vsel %vm1288, %v1300, 0.0
          %v1303 = vsel %vm1288, %v1301, 0.0
          %v1304 = vadd.f32 %v1302, %v1303
          %v1305 = vrot.slane %v1304, 4
          %v1306 = vadd.f32 %v1304, %v1305
          %v1307 = vrot.slane %v1306, 2
          %v1308 = vadd.f32 %v1306, %v1307
          %v1309 = vrot.slane %v1308, 1
          %v1310 = vadd.f32 %v1308, %v1309
          %vm1311 = vcmp.eq.s32.totalorder %v1244, 0
          %1313 = vset.pattern.permute.xlu0 0
          %1314 = vperm.xlu0 %1313, %v1297
          %v1315 = vpop.permute.xlu0 %1314
          %v1317 = vsel %vm1311, %v1315, 0.0
          %vm1318 = vcmp.eq.s32.totalorder %v1244, 1
          %1320 = vset.pattern.permute.xlu0 0
          %1321 = vperm.xlu0 %1320, %v1310
          %v1322 = vpop.permute.xlu0 %1321
          %v1324 = vsel %vm1318, %v1322, 0.0
          %v1325 = vadd.f32 %v1317, %v1324
          %1326 = vst [vmem:[#allocation20] sm:$0x1] %v1325
        $region104: #{tpu_custom_call.1} parent=55 // pred_fallthru
          _
        // Predicated region
        $region105: #{tpu_custom_call.1} parent=55 // pred_check
          %p1327 = pneg %p277
        $region106: #{tpu_custom_call.1} parent=55 // pred_check_branch
          %1329 = sbr.rel (%p1327) target = $region108
        $region107: #{tpu_custom_call.1} parent=55 // pred_region
          %s1330 = smul.u32 2, %s42
          %1332 = vsyncadd [#allocation7], 0
          %s1333 = smul.addr %s1330, 8
          %s1334 = scalar_lea.hbm %s10, %s1333
          %s1335 = sshll.u32 [#allocation17], 4
          %s1336 = int_to_ptr.vmem [resolvable:$true] %s1335
          %s1337 = sshll.u32 %s1334, 4
          %s1338 = int_to_ptr.hbm [resolvable:$true] %s1337
          %1343 = dma.vmem_to_hbm [thread:$0]  %s1336, 256, %s1338, [#allocation7], 128, 128, 8
        $region108: #{tpu_custom_call.1} parent=55 // pred_fallthru
          _
        // Predicated region
        $region109: #{tpu_custom_call.1} parent=55 // pred_check
          %p1344 = pneg %p303
        $region110: #{tpu_custom_call.1} parent=55 // pred_check_branch
          %1346 = sbr.rel (%p1344) target = $region112
        $region111: #{tpu_custom_call.1} parent=55 // pred_region
          %s1347 = smul.u32 2, %s42
          %1349 = vsyncadd [#allocation19], 0
          %s1350 = smul.addr %s1347, 8
          %s1351 = scalar_lea.hbm %s11, %s1350
          %s1352 = sshll.u32 [#allocation18], 4
          %s1353 = int_to_ptr.vmem [resolvable:$true] %s1352
          %s1354 = sshll.u32 %s1351, 4
          %s1355 = int_to_ptr.hbm [resolvable:$true] %s1354
          %1360 = dma.vmem_to_hbm [thread:$0]  %s1353, 256, %s1355, [#allocation19], 128, 128, 8
        $region112: #{tpu_custom_call.1} parent=55 // pred_fallthru
          _
        // Predicated region
        $region113: #{tpu_custom_call.1} parent=55 // pred_check
          %p1361 = pneg %p329
        $region114: #{tpu_custom_call.1} parent=55 // pred_check_branch
          %1363 = sbr.rel (%p1361) target = $region116
        $region115: #{tpu_custom_call.1} parent=55 // pred_region
          %1365 = vsyncadd [#allocation19], 0
          %s1366 = scalar_lea.hbm %s12, %s42
          %s1368 = sshll.u32 [#allocation20], 4
          %s1369 = int_to_ptr.vmem [resolvable:$true] %s1368
          %s1370 = sshll.u32 %s1366, 4
          %s1371 = int_to_ptr.hbm [resolvable:$true] %s1370
          %1373 = dma.vmem_to_hbm [thread:$0]  %s1369, 16, %s1371, [#allocation19]
        $region116: #{tpu_custom_call.1} parent=55 // pred_fallthru
          _
        // Predicated region
        $region117: #{tpu_custom_call.1} parent=55 // pred_check
          %p1374 = pneg %p277
        $region118: #{tpu_custom_call.1} parent=55 // pred_check_branch
          %1376 = sbr.rel (%p1374) target = $region120
        $region119: #{tpu_custom_call.1} parent=55 // pred_region
          %1378 = dma.done [#allocation7], 256
        $region120: #{tpu_custom_call.1} parent=55 // pred_fallthru
          _
        // Predicated region
        $region121: #{tpu_custom_call.1} parent=55 // pred_check
          %p1379 = pneg %p303
        $region122: #{tpu_custom_call.1} parent=55 // pred_check_branch
          %1381 = sbr.rel (%p1379) target = $region124
        $region123: #{tpu_custom_call.1} parent=55 // pred_region
          %1383 = dma.done [#allocation19], 256
        $region124: #{tpu_custom_call.1} parent=55 // pred_fallthru
          _
        // Predicated region
        $region125: #{tpu_custom_call.1} parent=55 // pred_check
          %p1384 = pneg %p329
        $region126: #{tpu_custom_call.1} parent=55 // pred_check_branch
          %1386 = sbr.rel (%p1384) target = $region128
        $region127: #{tpu_custom_call.1} parent=55 // pred_region
          %1388 = dma.done [#allocation19], 16
        $region128: #{tpu_custom_call.1} parent=55 // pred_fallthru
          _
      $region56: #{tpu_custom_call.1} parent=5 // pred_fallthru
        _
      %p1389 = scmp.le.s32.totalorder 2, %s33
      // Predicated region
      $region129: #{tpu_custom_call.1} parent=5 // pred_check
        %p1390 = pneg %p1389
      $region130: #{tpu_custom_call.1} parent=5 // pred_check_branch
        %1392 = sbr.rel (%p1390) target = $region132
      $region131: #{tpu_custom_call.1} parent=5 // pred_region
        %s1393 = ssub.s32 %s33, 2
      $region132: #{tpu_custom_call.1} parent=5 // pred_fallthru
        _
    $region6: #{tpu_custom_call.1} parent=1 // loop_footer
      %s37 = sadd.s32 1, %s33
    $region7: #{tpu_custom_call.1} parent=1 // loop_footer_branch
      %32 = sbr.rel target = $region3
    $region8: #{tpu_custom_call.1} parent=1 // loop_exit
      _
    %1394 = vsyncpa [#allocation6], 1
    %s1395 = scalar_lea.sflag [#allocation6], 1
    %1396 = vsyncpa %s1395, 1
    %1397 = vsyncpa [#allocation9], 1
    %1398 = vsyncpa [#allocation12], 1
    %1399 = vsyncpa [#allocation15], 1
    %1400 = vsyncpa [#allocation7], 1
    %s1401 = scalar_lea.sflag [#allocation7], 1
    %1402 = vsyncpa %s1401, 1
    %1403 = vsyncpa [#allocation19], 1

</llo_original>
